<compile_context>
chip_gen: v7x
topology: tpu7x:2x2x1
jax: 0.10.0
libtpu: 0.0.40
codegen_flags: <defaults>
</compile_context>

<pallas_src>
import functools

import numpy as np
import jax
import jax.numpy as jnp
from jax import lax
from jax.experimental import pallas as pl
from jax.experimental.pallas import tpu as pltpu


def _cnn_kernel(L, x_ref, w1_ref, b1_ref, w2_ref, b2_ref,
                wfc1t_ref, bfc1_ref, wfc2t_ref, bfc2_ref, out_ref):
    f32 = jnp.float32
    TB, Lp = x_ref.shape          # batch tile rows, padded time (mult of 128)

    # Lane masks built in-kernel (tiny (1, Lp) VPU work, no HBM traffic),
    # broadcast to (TB, Lp) once and reused below.
    lane = lax.broadcasted_iota(jnp.int32, (1, Lp), 1)
    lmask = jnp.broadcast_to((lane < L).astype(f32), (TB, Lp))
    amask = jnp.broadcast_to(
        (((lane % 4) == 0) & (lane < L)).astype(f32) * (4.0 / L), (TB, Lp))

    # Roll before replicating: +-1 time shifts on the raw (TB, Lp) input.
    # Lp has >= 2 zero lanes of slack, so the circular wrap brings zeros
    # across the boundary (== Conv1d padding=1 semantics).
    x = x_ref[...]
    xm = pltpu.roll(x, 1, axis=1)           # x[t-1]
    xp = pltpu.roll(x, Lp - 1, axis=1)      # x[t+1] (x[L] = 0 handles the pad)

    # conv1 (1->4, k=3, pad=1) + bias + ReLU, MaxPool1d(2,2) kept on even
    # lanes.  Weights are SMEM scalars -> scalar*vector splats (no lane tiles).
    ps, pms, pps = [], [], []
    for c in range(4):
        y = (w1_ref[3 * c + 0] * xm + w1_ref[3 * c + 1] * x
             + w1_ref[3 * c + 2] * xp + b1_ref[c])
        y = jnp.maximum(y, 0.0) * lmask                      # ReLU; zero t >= L
        p = jnp.maximum(y, pltpu.roll(y, Lp - 1, axis=1))    # pool1 (even lanes)
        ps.append(p)
        pms.append(pltpu.roll(p, 2, axis=1))                 # p1[j-1] at lane 2j
        pps.append(pltpu.roll(p, Lp - 2, axis=1))            # p1[j+1] at lane 2j

    # conv2 (4->8, k=3, pad=1), MaxPool1d(2,2), masked global mean.
    feat_cols = []
    for o in range(8):
        z = None
        for c in range(4):
            base = 12 * o + 3 * c
            t = (w2_ref[base + 0] * pms[c] + w2_ref[base + 1] * ps[c]
                 + w2_ref[base + 2] * pps[c])
            z = t if z is None else z + t
        q = jnp.maximum(z, pltpu.roll(z, Lp - 2, axis=1))    # pool2 (lanes %4==0)
        # Dropout(0.25) is identity at inference; amask selects the L/4 valid
        # pooled lanes and folds in the 1/(L/4) of AdaptiveAvgPool1d(1).
        feat_cols.append(jnp.sum(q * amask, axis=1, keepdims=True))   # (TB, 1)

    # conv2 bias commutes through max-pool and mean: add it once here (exact).
    feat = jnp.concatenate(feat_cols, axis=1) + b2_ref[...]           # (TB, 8)

    # fc1 + ReLU, fc2 (only MXU use in the kernel).
    h = jnp.dot(feat, wfc1t_ref[...], preferred_element_type=f32) + bfc1_ref[...]
    h = jnp.maximum(h, 0.0)
    out = jnp.dot(h, wfc2t_ref[...], preferred_element_type=f32) + bfc2_ref[...]
    out_ref[...] = out.astype(out_ref.dtype)


def _vmem_budget_bytes():
    """Half of physical VMEM: 64 MiB on v5e/v6e (128 MiB), 32 MiB on v7x (64 MiB)."""
    cap = 128 * 1024 * 1024
    try:
        cap = int(pltpu.get_tpu_info().vmem_capacity_bytes)
    except Exception:
        pass
    return min(cap, 128 * 1024 * 1024) // 2


def audio_classifier_forward(x, params):
    """x: (B, 1, L) float32, PyTorch NCW convention.  Returns squeeze((B, 2))."""
    w1, b1, w2, b2, wfc1, bfc1, wfc2, bfc2 = [
        jnp.asarray(p, jnp.float32) for p in params]
    B, C, L = x.shape
    # L % 4 == 0 is required by the lane-masked pooling/average (design
    # restriction; PyTorch floor-mode pooling for other L is not supported).
    assert C == 1 and L % 4 == 0

    # Time padded to a lane multiple with >= 2 zero lanes of slack (roll wrap).
    Lp = ((L + 2 + 127) // 128) * 128

    # Batch tile sized from an explicit VMEM budget: the live set is ~22
    # (TB, Lp) f32 slabs plus the double-buffered x tile; 120*Lp bytes/row is
    # a conservative bound.
    # TODO(synk): for very long clips (120 * Lp * 8 > budget) add an
    # "arbitrary" time-chunk grid axis with a 2-lane halo and accumulate the
    # masked lane-sum across chunks; not needed for typical audio lengths.
    vmem_budget = _vmem_budget_bytes()
    tb = max(8, min(512, (vmem_budget // (120 * Lp)) // 8 * 8))
    bp8 = ((B + 7) // 8) * 8
    if B > 8:
        # Force >= 2 grid steps so the "parallel" batch axis spans both
        # TensorCores on v7x megacore.
        tb = min(tb, max(8, ((bp8 // 2 + 7) // 8) * 8))
    tb = max(8, min(tb, bp8))
    Bp = ((B + tb - 1) // tb) * tb
    nb = Bp // tb

    xs = jnp.pad(x[:, 0, :].astype(jnp.float32), ((0, Bp - B), (0, Lp - L)))

    # Conv weights as flat SMEM scalar tables; FC weights stay lane-dense.
    w1f = w1.reshape(-1)                  # (12,)  [c, k] row-major
    b1f = b1.reshape(-1)                  # (4,)
    w2f = w2.reshape(-1)                  # (96,)  [o, c, k] row-major
    b2r = b2.reshape(1, 8)
    wfc1t = wfc1.T                        # (8, 64)
    bfc1r = bfc1.reshape(1, 64)
    wfc2t = wfc2.T                        # (64, 2)
    bfc2r = bfc2.reshape(1, 2)

    flops = int(B) * (2 * 12 * L + 2 * 96 * (L // 2) + 2 * 8 * 64 + 2 * 64 * 2)
    bytes_accessed = 4 * (int(B) * L + int(B) * 2 + sum(
        int(p.size) for p in (w1, b1, w2, b2, wfc1, bfc1, wfc2, bfc2)))

    smem = pl.BlockSpec(memory_space=pltpu.MemorySpace.SMEM)
    full = lambda shape: pl.BlockSpec(shape, lambda i: (0, 0))

    out = pl.pallas_call(
        functools.partial(_cnn_kernel, L),
        out_shape=jax.ShapeDtypeStruct((Bp, 2), jnp.float32),
        grid=(nb,),
        in_specs=[
            pl.BlockSpec((tb, Lp), lambda i: (i, 0)),      # x batch tile
            smem, smem, smem,                              # w1, b1, w2 scalars
            full((1, 8)),                                  # conv2 bias
            full((8, 64)), full((1, 64)),                  # fc1
            full((64, 2)), full((1, 2)),                   # fc2
        ],
        out_specs=pl.BlockSpec((tb, 2), lambda i: (i, 0)),
        compiler_params=pltpu.CompilerParams(
            dimension_semantics=("parallel",),
            vmem_limit_bytes=vmem_budget),
        cost_estimate=pl.CostEstimate(flops=flops, transcendentals=0,
                                      bytes_accessed=bytes_accessed),
    )(xs, w1f, b1f, w2f, b2r, wfc1t, bfc1r, wfc2t, bfc2r)

    return jnp.squeeze(out[:B])                            # matches torch .squeeze()


def _ref_forward(x, params):
    """Pure-JAX reference of the PyTorch forward (eval mode)."""
    w1, b1, w2, b2, wfc1, bfc1, wfc2, bfc2 = params
    dn1 = lax.conv_dimension_numbers(x.shape, w1.shape, ('NCH', 'OIH', 'NCH'))
    y = lax.conv_general_dilated(x, w1, (1,), [(1, 1)], dimension_numbers=dn1)
    y = jnp.maximum(y + b1[None, :, None], 0.0)
    y = jnp.max(y.reshape(y.shape[0], y.shape[1], -1, 2), axis=-1)
    dn2 = lax.conv_dimension_numbers(y.shape, w2.shape, ('NCH', 'OIH', 'NCH'))
    y = lax.conv_general_dilated(y, w2, (1,), [(1, 1)], dimension_numbers=dn2)
    y = y + b2[None, :, None]
    y = jnp.max(y.reshape(y.shape[0], y.shape[1], -1, 2), axis=-1)
    y = jnp.mean(y, axis=-1)
    y = jnp.maximum(y @ wfc1.T + bfc1, 0.0)
    y = y @ wfc2.T + bfc2
    return jnp.squeeze(y)


def _init_params(key):
    ks = jax.random.split(key, 8)

    def u(k, shape, fan_in):
        bound = 1.0 / np.sqrt(fan_in)
        return jax.random.uniform(k, shape, jnp.float32, -bound, bound)

    w1 = u(ks[0], (4, 1, 3), 3);   b1 = u(ks[1], (4,), 3)
    w2 = u(ks[2], (8, 4, 3), 12);  b2 = u(ks[3], (8,), 12)
    wfc1 = u(ks[4], (64, 8), 8);   bfc1 = u(ks[5], (64,), 8)
    wfc2 = u(ks[6], (2, 64), 64);  bfc2 = u(ks[7], (2,), 64)
    return (w1, b1, w2, b2, wfc1, bfc1, wfc2, bfc2)


if __name__ == "__main__":
    key = jax.random.PRNGKey(0)
    pkey, xkey = jax.random.split(key)
    params = _init_params(pkey)
    x = jax.random.normal(xkey, (2, 1, 16), dtype=jnp.float32)

    out = audio_classifier_forward(x, params)
    out = jax.block_until_ready(out)

    ref = _ref_forward(x, params)
    assert out.shape == ref.shape == (2, 2)
    np.testing.assert_allclose(np.asarray(out), np.asarray(ref),
                               atol=1e-4, rtol=1e-4)
    print("KERNEL_OK")
</pallas_src>

<mosaic_0001>
module attributes {stable_mosaic.version = 11 : i64} {
  func.func @_cnn_kernel(%arg0: i32, %arg1: memref<8x128xf32, #tpu.memory_space<vmem>>, %arg2: memref<12xf32, #tpu.memory_space<smem>>, %arg3: memref<4xf32, #tpu.memory_space<smem>>, %arg4: memref<96xf32, #tpu.memory_space<smem>>, %arg5: memref<1x8xf32, #tpu.memory_space<vmem>>, %arg6: memref<8x64xf32, #tpu.memory_space<vmem>>, %arg7: memref<1x64xf32, #tpu.memory_space<vmem>>, %arg8: memref<64x2xf32, #tpu.memory_space<vmem>>, %arg9: memref<1x2xf32, #tpu.memory_space<vmem>>, %arg10: memref<8x2xf32, #tpu.memory_space<vmem>>) attributes {dimension_semantics = [#tpu.dimension_semantics<parallel>], iteration_bounds = array<i64: 1>, scalar_prefetch = 0 : i64, scratch_operands = 0 : i64, tpu.core_type = #tpu.core_type<tc>, window_params = [{transform_indices = @transform_0, window_bounds = array<i64: 8, 128>}, {transform_indices = @transform_1, window_bounds = array<i64: 12>}, {transform_indices = @transform_2, window_bounds = array<i64: 4>}, {transform_indices = @transform_3, window_bounds = array<i64: 96>}, {pipeline_mode = #tpu.pipeline_mode<synchronous>, transform_indices = @transform_4, window_bounds = array<i64: 1, 8>}, {pipeline_mode = #tpu.pipeline_mode<synchronous>, transform_indices = @transform_5, window_bounds = array<i64: 8, 64>}, {pipeline_mode = #tpu.pipeline_mode<synchronous>, transform_indices = @transform_6, window_bounds = array<i64: 1, 64>}, {pipeline_mode = #tpu.pipeline_mode<synchronous>, transform_indices = @transform_7, window_bounds = array<i64: 64, 2>}, {pipeline_mode = #tpu.pipeline_mode<synchronous>, transform_indices = @transform_8, window_bounds = array<i64: 1, 2>}, {transform_indices = @transform_9, window_bounds = array<i64: 8, 2>}]} {
    %0 = tpu.iota {dimensions = array<i32: 1>} : vector<1x128xi32>
    %c16_i32 = arith.constant 16 : i32
    %1 = vector.broadcast %c16_i32 : i32 to vector<1x128xi32>
    %2 = arith.cmpi slt, %0, %1 : vector<1x128xi32>
    %3 = arith.extui %2 : vector<1x128xi1> to vector<1x128xi32>
    %4 = arith.sitofp %3 : vector<1x128xi32> to vector<1x128xf32>
    %5 = vector.shape_cast %4 : vector<1x128xf32> to vector<1x128xf32>
    %6 = vector.broadcast %5 : vector<1x128xf32> to vector<8x128xf32>
    %c4_i32 = arith.constant 4 : i32
    %c0_i32 = arith.constant 0 : i32
    %7 = arith.cmpi eq, %c4_i32, %c0_i32 : i32
    %c1_i32 = arith.constant 1 : i32
    %8 = arith.select %7, %c1_i32, %c4_i32 : i32
    %9 = vector.broadcast %8 : i32 to vector<1x128xi32>
    %10 = arith.remsi %0, %9 : vector<1x128xi32>
    %c0_i32_0 = arith.constant 0 : i32
    %11 = vector.broadcast %c0_i32_0 : i32 to vector<1x128xi32>
    %12 = arith.cmpi ne, %10, %11 : vector<1x128xi32>
    %c0_i32_1 = arith.constant 0 : i32
    %13 = vector.broadcast %c0_i32_1 : i32 to vector<1x128xi32>
    %14 = arith.cmpi slt, %10, %13 : vector<1x128xi32>
    %c0_i32_2 = arith.constant 0 : i32
    %15 = arith.cmpi slt, %8, %c0_i32_2 : i32
    %16 = vector.broadcast %15 : i1 to vector<1x128xi1>
    %17 = vector.broadcast %16 : vector<1x128xi1> to vector<1x128xi1>
    %18 = arith.xori %14, %17 : vector<1x128xi1>
    %19 = arith.andi %18, %12 : vector<1x128xi1>
    %20 = vector.broadcast %8 : i32 to vector<1x128xi32>
    %21 = arith.addi %10, %20 : vector<1x128xi32>
    %22 = arith.select %19, %21, %10 : vector<1x128xi1>, vector<1x128xi32>
    %c0_i32_3 = arith.constant 0 : i32
    %23 = vector.broadcast %c0_i32_3 : i32 to vector<1x128xi32>
    %24 = arith.cmpi eq, %22, %23 : vector<1x128xi32>
    %c16_i32_4 = arith.constant 16 : i32
    %25 = vector.broadcast %c16_i32_4 : i32 to vector<1x128xi32>
    %26 = arith.cmpi slt, %0, %25 : vector<1x128xi32>
    %27 = arith.andi %24, %26 : vector<1x128xi1>
    %28 = arith.extui %27 : vector<1x128xi1> to vector<1x128xi32>
    %29 = arith.sitofp %28 : vector<1x128xi32> to vector<1x128xf32>
    %cst = arith.constant 2.500000e-01 : f32
    %30 = vector.broadcast %cst : f32 to vector<1x128xf32>
    %31 = arith.mulf %29, %30 : vector<1x128xf32>
    %32 = vector.shape_cast %31 : vector<1x128xf32> to vector<1x128xf32>
    %33 = vector.broadcast %32 : vector<1x128xf32> to vector<8x128xf32>
    %c0 = arith.constant 0 : index
    %c0_5 = arith.constant 0 : index
    %34 = vector.load %arg1[%c0, %c0_5] : memref<8x128xf32, #tpu.memory_space<vmem>>, vector<8x128xf32>
    %c1_i32_6 = arith.constant 1 : i32
    %35 = tpu.dynamic_rotate %34 by %c1_i32_6 dim 1 : vector<8x128xf32>, i32 -> vector<8x128xf32>
    %c127_i32 = arith.constant 127 : i32
    %36 = tpu.dynamic_rotate %34 by %c127_i32 dim 1 : vector<8x128xf32>, i32 -> vector<8x128xf32>
    %c0_7 = arith.constant 0 : index
    %37 = memref.load %arg2[%c0_7] : memref<12xf32, #tpu.memory_space<smem>>
    %38 = vector.broadcast %37 : f32 to vector<8x128xf32>
    %39 = arith.mulf %38, %35 : vector<8x128xf32>
    %c1 = arith.constant 1 : index
    %40 = memref.load %arg2[%c1] : memref<12xf32, #tpu.memory_space<smem>>
    %41 = vector.broadcast %40 : f32 to vector<8x128xf32>
    %42 = arith.mulf %41, %34 : vector<8x128xf32>
    %43 = arith.addf %39, %42 : vector<8x128xf32>
    %c2 = arith.constant 2 : index
    %44 = memref.load %arg2[%c2] : memref<12xf32, #tpu.memory_space<smem>>
    %45 = vector.broadcast %44 : f32 to vector<8x128xf32>
    %46 = arith.mulf %45, %36 : vector<8x128xf32>
    %47 = arith.addf %43, %46 : vector<8x128xf32>
    %c0_8 = arith.constant 0 : index
    %48 = memref.load %arg3[%c0_8] : memref<4xf32, #tpu.memory_space<smem>>
    %49 = vector.broadcast %48 : f32 to vector<8x128xf32>
    %50 = arith.addf %47, %49 : vector<8x128xf32>
    %cst_9 = arith.constant 0.000000e+00 : f32
    %51 = vector.broadcast %cst_9 : f32 to vector<8x128xf32>
    %52 = arith.maximumf %50, %51 : vector<8x128xf32>
    %53 = arith.mulf %52, %6 : vector<8x128xf32>
    %c127_i32_10 = arith.constant 127 : i32
    %54 = tpu.dynamic_rotate %53 by %c127_i32_10 dim 1 : vector<8x128xf32>, i32 -> vector<8x128xf32>
    %55 = arith.maximumf %53, %54 : vector<8x128xf32>
    %c2_i32 = arith.constant 2 : i32
    %56 = tpu.dynamic_rotate %55 by %c2_i32 dim 1 : vector<8x128xf32>, i32 -> vector<8x128xf32>
    %c126_i32 = arith.constant 126 : i32
    %57 = tpu.dynamic_rotate %55 by %c126_i32 dim 1 : vector<8x128xf32>, i32 -> vector<8x128xf32>
    %c3 = arith.constant 3 : index
    %58 = memref.load %arg2[%c3] : memref<12xf32, #tpu.memory_space<smem>>
    %59 = vector.broadcast %58 : f32 to vector<8x128xf32>
    %60 = arith.mulf %59, %35 : vector<8x128xf32>
    %c4 = arith.constant 4 : index
    %61 = memref.load %arg2[%c4] : memref<12xf32, #tpu.memory_space<smem>>
    %62 = vector.broadcast %61 : f32 to vector<8x128xf32>
    %63 = arith.mulf %62, %34 : vector<8x128xf32>
    %64 = arith.addf %60, %63 : vector<8x128xf32>
    %c5 = arith.constant 5 : index
    %65 = memref.load %arg2[%c5] : memref<12xf32, #tpu.memory_space<smem>>
    %66 = vector.broadcast %65 : f32 to vector<8x128xf32>
    %67 = arith.mulf %66, %36 : vector<8x128xf32>
    %68 = arith.addf %64, %67 : vector<8x128xf32>
    %c1_11 = arith.constant 1 : index
    %69 = memref.load %arg3[%c1_11] : memref<4xf32, #tpu.memory_space<smem>>
    %70 = vector.broadcast %69 : f32 to vector<8x128xf32>
    %71 = arith.addf %68, %70 : vector<8x128xf32>
    %cst_12 = arith.constant 0.000000e+00 : f32
    %72 = vector.broadcast %cst_12 : f32 to vector<8x128xf32>
    %73 = arith.maximumf %71, %72 : vector<8x128xf32>
    %74 = arith.mulf %73, %6 : vector<8x128xf32>
    %c127_i32_13 = arith.constant 127 : i32
    %75 = tpu.dynamic_rotate %74 by %c127_i32_13 dim 1 : vector<8x128xf32>, i32 -> vector<8x128xf32>
    %76 = arith.maximumf %74, %75 : vector<8x128xf32>
    %c2_i32_14 = arith.constant 2 : i32
    %77 = tpu.dynamic_rotate %76 by %c2_i32_14 dim 1 : vector<8x128xf32>, i32 -> vector<8x128xf32>
    %c126_i32_15 = arith.constant 126 : i32
    %78 = tpu.dynamic_rotate %76 by %c126_i32_15 dim 1 : vector<8x128xf32>, i32 -> vector<8x128xf32>
    %c6 = arith.constant 6 : index
    %79 = memref.load %arg2[%c6] : memref<12xf32, #tpu.memory_space<smem>>
    %80 = vector.broadcast %79 : f32 to vector<8x128xf32>
    %81 = arith.mulf %80, %35 : vector<8x128xf32>
    %c7 = arith.constant 7 : index
    %82 = memref.load %arg2[%c7] : memref<12xf32, #tpu.memory_space<smem>>
    %83 = vector.broadcast %82 : f32 to vector<8x128xf32>
    %84 = arith.mulf %83, %34 : vector<8x128xf32>
    %85 = arith.addf %81, %84 : vector<8x128xf32>
    %c8 = arith.constant 8 : index
    %86 = memref.load %arg2[%c8] : memref<12xf32, #tpu.memory_space<smem>>
    %87 = vector.broadcast %86 : f32 to vector<8x128xf32>
    %88 = arith.mulf %87, %36 : vector<8x128xf32>
    %89 = arith.addf %85, %88 : vector<8x128xf32>
    %c2_16 = arith.constant 2 : index
    %90 = memref.load %arg3[%c2_16] : memref<4xf32, #tpu.memory_space<smem>>
    %91 = vector.broadcast %90 : f32 to vector<8x128xf32>
    %92 = arith.addf %89, %91 : vector<8x128xf32>
    %cst_17 = arith.constant 0.000000e+00 : f32
    %93 = vector.broadcast %cst_17 : f32 to vector<8x128xf32>
    %94 = arith.maximumf %92, %93 : vector<8x128xf32>
    %95 = arith.mulf %94, %6 : vector<8x128xf32>
    %c127_i32_18 = arith.constant 127 : i32
    %96 = tpu.dynamic_rotate %95 by %c127_i32_18 dim 1 : vector<8x128xf32>, i32 -> vector<8x128xf32>
    %97 = arith.maximumf %95, %96 : vector<8x128xf32>
    %c2_i32_19 = arith.constant 2 : i32
    %98 = tpu.dynamic_rotate %97 by %c2_i32_19 dim 1 : vector<8x128xf32>, i32 -> vector<8x128xf32>
    %c126_i32_20 = arith.constant 126 : i32
    %99 = tpu.dynamic_rotate %97 by %c126_i32_20 dim 1 : vector<8x128xf32>, i32 -> vector<8x128xf32>
    %c9 = arith.constant 9 : index
    %100 = memref.load %arg2[%c9] : memref<12xf32, #tpu.memory_space<smem>>
    %101 = vector.broadcast %100 : f32 to vector<8x128xf32>
    %102 = arith.mulf %101, %35 : vector<8x128xf32>
    %c10 = arith.constant 10 : index
    %103 = memref.load %arg2[%c10] : memref<12xf32, #tpu.memory_space<smem>>
    %104 = vector.broadcast %103 : f32 to vector<8x128xf32>
    %105 = arith.mulf %104, %34 : vector<8x128xf32>
    %106 = arith.addf %102, %105 : vector<8x128xf32>
    %c11 = arith.constant 11 : index
    %107 = memref.load %arg2[%c11] : memref<12xf32, #tpu.memory_space<smem>>
    %108 = vector.broadcast %107 : f32 to vector<8x128xf32>
    %109 = arith.mulf %108, %36 : vector<8x128xf32>
    %110 = arith.addf %106, %109 : vector<8x128xf32>
    %c3_21 = arith.constant 3 : index
    %111 = memref.load %arg3[%c3_21] : memref<4xf32, #tpu.memory_space<smem>>
    %112 = vector.broadcast %111 : f32 to vector<8x128xf32>
    %113 = arith.addf %110, %112 : vector<8x128xf32>
    %cst_22 = arith.constant 0.000000e+00 : f32
    %114 = vector.broadcast %cst_22 : f32 to vector<8x128xf32>
    %115 = arith.maximumf %113, %114 : vector<8x128xf32>
    %116 = arith.mulf %115, %6 : vector<8x128xf32>
    %c127_i32_23 = arith.constant 127 : i32
    %117 = tpu.dynamic_rotate %116 by %c127_i32_23 dim 1 : vector<8x128xf32>, i32 -> vector<8x128xf32>
    %118 = arith.maximumf %116, %117 : vector<8x128xf32>
    %c2_i32_24 = arith.constant 2 : i32
    %119 = tpu.dynamic_rotate %118 by %c2_i32_24 dim 1 : vector<8x128xf32>, i32 -> vector<8x128xf32>
    %c126_i32_25 = arith.constant 126 : i32
    %120 = tpu.dynamic_rotate %118 by %c126_i32_25 dim 1 : vector<8x128xf32>, i32 -> vector<8x128xf32>
    %c0_26 = arith.constant 0 : index
    %121 = memref.load %arg4[%c0_26] : memref<96xf32, #tpu.memory_space<smem>>
    %122 = vector.broadcast %121 : f32 to vector<8x128xf32>
    %123 = arith.mulf %122, %56 : vector<8x128xf32>
    %c1_27 = arith.constant 1 : index
    %124 = memref.load %arg4[%c1_27] : memref<96xf32, #tpu.memory_space<smem>>
    %125 = vector.broadcast %124 : f32 to vector<8x128xf32>
    %126 = arith.mulf %125, %55 : vector<8x128xf32>
    %127 = arith.addf %123, %126 : vector<8x128xf32>
    %c2_28 = arith.constant 2 : index
    %128 = memref.load %arg4[%c2_28] : memref<96xf32, #tpu.memory_space<smem>>
    %129 = vector.broadcast %128 : f32 to vector<8x128xf32>
    %130 = arith.mulf %129, %57 : vector<8x128xf32>
    %131 = arith.addf %127, %130 : vector<8x128xf32>
    %c3_29 = arith.constant 3 : index
    %132 = memref.load %arg4[%c3_29] : memref<96xf32, #tpu.memory_space<smem>>
    %133 = vector.broadcast %132 : f32 to vector<8x128xf32>
    %134 = arith.mulf %133, %77 : vector<8x128xf32>
    %c4_30 = arith.constant 4 : index
    %135 = memref.load %arg4[%c4_30] : memref<96xf32, #tpu.memory_space<smem>>
    %136 = vector.broadcast %135 : f32 to vector<8x128xf32>
    %137 = arith.mulf %136, %76 : vector<8x128xf32>
    %138 = arith.addf %134, %137 : vector<8x128xf32>
    %c5_31 = arith.constant 5 : index
    %139 = memref.load %arg4[%c5_31] : memref<96xf32, #tpu.memory_space<smem>>
    %140 = vector.broadcast %139 : f32 to vector<8x128xf32>
    %141 = arith.mulf %140, %78 : vector<8x128xf32>
    %142 = arith.addf %138, %141 : vector<8x128xf32>
    %143 = arith.addf %131, %142 : vector<8x128xf32>
    %c6_32 = arith.constant 6 : index
    %144 = memref.load %arg4[%c6_32] : memref<96xf32, #tpu.memory_space<smem>>
    %145 = vector.broadcast %144 : f32 to vector<8x128xf32>
    %146 = arith.mulf %145, %98 : vector<8x128xf32>
    %c7_33 = arith.constant 7 : index
    %147 = memref.load %arg4[%c7_33] : memref<96xf32, #tpu.memory_space<smem>>
    %148 = vector.broadcast %147 : f32 to vector<8x128xf32>
    %149 = arith.mulf %148, %97 : vector<8x128xf32>
    %150 = arith.addf %146, %149 : vector<8x128xf32>
    %c8_34 = arith.constant 8 : index
    %151 = memref.load %arg4[%c8_34] : memref<96xf32, #tpu.memory_space<smem>>
    %152 = vector.broadcast %151 : f32 to vector<8x128xf32>
    %153 = arith.mulf %152, %99 : vector<8x128xf32>
    %154 = arith.addf %150, %153 : vector<8x128xf32>
    %155 = arith.addf %143, %154 : vector<8x128xf32>
    %c9_35 = arith.constant 9 : index
    %156 = memref.load %arg4[%c9_35] : memref<96xf32, #tpu.memory_space<smem>>
    %157 = vector.broadcast %156 : f32 to vector<8x128xf32>
    %158 = arith.mulf %157, %119 : vector<8x128xf32>
    %c10_36 = arith.constant 10 : index
    %159 = memref.load %arg4[%c10_36] : memref<96xf32, #tpu.memory_space<smem>>
    %160 = vector.broadcast %159 : f32 to vector<8x128xf32>
    %161 = arith.mulf %160, %118 : vector<8x128xf32>
    %162 = arith.addf %158, %161 : vector<8x128xf32>
    %c11_37 = arith.constant 11 : index
    %163 = memref.load %arg4[%c11_37] : memref<96xf32, #tpu.memory_space<smem>>
    %164 = vector.broadcast %163 : f32 to vector<8x128xf32>
    %165 = arith.mulf %164, %120 : vector<8x128xf32>
    %166 = arith.addf %162, %165 : vector<8x128xf32>
    %167 = arith.addf %155, %166 : vector<8x128xf32>
    %c126_i32_38 = arith.constant 126 : i32
    %168 = tpu.dynamic_rotate %167 by %c126_i32_38 dim 1 : vector<8x128xf32>, i32 -> vector<8x128xf32>
    %169 = arith.maximumf %167, %168 : vector<8x128xf32>
    %170 = arith.mulf %169, %33 : vector<8x128xf32>
    %cst_39 = arith.constant dense<0.000000e+00> : vector<8xf32>
    %171 = vector.multi_reduction <add>, %170, %cst_39 [1] : vector<8x128xf32> to vector<8xf32>
    %172 = vector.shape_cast %171 : vector<8xf32> to vector<8x1xf32>
    %c12 = arith.constant 12 : index
    %173 = memref.load %arg4[%c12] : memref<96xf32, #tpu.memory_space<smem>>
    %174 = vector.broadcast %173 : f32 to vector<8x128xf32>
    %175 = arith.mulf %174, %56 : vector<8x128xf32>
    %c13 = arith.constant 13 : index
    %176 = memref.load %arg4[%c13] : memref<96xf32, #tpu.memory_space<smem>>
    %177 = vector.broadcast %176 : f32 to vector<8x128xf32>
    %178 = arith.mulf %177, %55 : vector<8x128xf32>
    %179 = arith.addf %175, %178 : vector<8x128xf32>
    %c14 = arith.constant 14 : index
    %180 = memref.load %arg4[%c14] : memref<96xf32, #tpu.memory_space<smem>>
    %181 = vector.broadcast %180 : f32 to vector<8x128xf32>
    %182 = arith.mulf %181, %57 : vector<8x128xf32>
    %183 = arith.addf %179, %182 : vector<8x128xf32>
    %c15 = arith.constant 15 : index
    %184 = memref.load %arg4[%c15] : memref<96xf32, #tpu.memory_space<smem>>
    %185 = vector.broadcast %184 : f32 to vector<8x128xf32>
    %186 = arith.mulf %185, %77 : vector<8x128xf32>
    %c16 = arith.constant 16 : index
    %187 = memref.load %arg4[%c16] : memref<96xf32, #tpu.memory_space<smem>>
    %188 = vector.broadcast %187 : f32 to vector<8x128xf32>
    %189 = arith.mulf %188, %76 : vector<8x128xf32>
    %190 = arith.addf %186, %189 : vector<8x128xf32>
    %c17 = arith.constant 17 : index
    %191 = memref.load %arg4[%c17] : memref<96xf32, #tpu.memory_space<smem>>
    %192 = vector.broadcast %191 : f32 to vector<8x128xf32>
    %193 = arith.mulf %192, %78 : vector<8x128xf32>
    %194 = arith.addf %190, %193 : vector<8x128xf32>
    %195 = arith.addf %183, %194 : vector<8x128xf32>
    %c18 = arith.constant 18 : index
    %196 = memref.load %arg4[%c18] : memref<96xf32, #tpu.memory_space<smem>>
    %197 = vector.broadcast %196 : f32 to vector<8x128xf32>
    %198 = arith.mulf %197, %98 : vector<8x128xf32>
    %c19 = arith.constant 19 : index
    %199 = memref.load %arg4[%c19] : memref<96xf32, #tpu.memory_space<smem>>
    %200 = vector.broadcast %199 : f32 to vector<8x128xf32>
    %201 = arith.mulf %200, %97 : vector<8x128xf32>
    %202 = arith.addf %198, %201 : vector<8x128xf32>
    %c20 = arith.constant 20 : index
    %203 = memref.load %arg4[%c20] : memref<96xf32, #tpu.memory_space<smem>>
    %204 = vector.broadcast %203 : f32 to vector<8x128xf32>
    %205 = arith.mulf %204, %99 : vector<8x128xf32>
    %206 = arith.addf %202, %205 : vector<8x128xf32>
    %207 = arith.addf %195, %206 : vector<8x128xf32>
    %c21 = arith.constant 21 : index
    %208 = memref.load %arg4[%c21] : memref<96xf32, #tpu.memory_space<smem>>
    %209 = vector.broadcast %208 : f32 to vector<8x128xf32>
    %210 = arith.mulf %209, %119 : vector<8x128xf32>
    %c22 = arith.constant 22 : index
    %211 = memref.load %arg4[%c22] : memref<96xf32, #tpu.memory_space<smem>>
    %212 = vector.broadcast %211 : f32 to vector<8x128xf32>
    %213 = arith.mulf %212, %118 : vector<8x128xf32>
    %214 = arith.addf %210, %213 : vector<8x128xf32>
    %c23 = arith.constant 23 : index
    %215 = memref.load %arg4[%c23] : memref<96xf32, #tpu.memory_space<smem>>
    %216 = vector.broadcast %215 : f32 to vector<8x128xf32>
    %217 = arith.mulf %216, %120 : vector<8x128xf32>
    %218 = arith.addf %214, %217 : vector<8x128xf32>
    %219 = arith.addf %207, %218 : vector<8x128xf32>
    %c126_i32_40 = arith.constant 126 : i32
    %220 = tpu.dynamic_rotate %219 by %c126_i32_40 dim 1 : vector<8x128xf32>, i32 -> vector<8x128xf32>
    %221 = arith.maximumf %219, %220 : vector<8x128xf32>
    %222 = arith.mulf %221, %33 : vector<8x128xf32>
    %cst_41 = arith.constant dense<0.000000e+00> : vector<8xf32>
    %223 = vector.multi_reduction <add>, %222, %cst_41 [1] : vector<8x128xf32> to vector<8xf32>
    %224 = vector.shape_cast %223 : vector<8xf32> to vector<8x1xf32>
    %c24 = arith.constant 24 : index
    %225 = memref.load %arg4[%c24] : memref<96xf32, #tpu.memory_space<smem>>
    %226 = vector.broadcast %225 : f32 to vector<8x128xf32>
    %227 = arith.mulf %226, %56 : vector<8x128xf32>
    %c25 = arith.constant 25 : index
    %228 = memref.load %arg4[%c25] : memref<96xf32, #tpu.memory_space<smem>>
    %229 = vector.broadcast %228 : f32 to vector<8x128xf32>
    %230 = arith.mulf %229, %55 : vector<8x128xf32>
    %231 = arith.addf %227, %230 : vector<8x128xf32>
    %c26 = arith.constant 26 : index
    %232 = memref.load %arg4[%c26] : memref<96xf32, #tpu.memory_space<smem>>
    %233 = vector.broadcast %232 : f32 to vector<8x128xf32>
    %234 = arith.mulf %233, %57 : vector<8x128xf32>
    %235 = arith.addf %231, %234 : vector<8x128xf32>
    %c27 = arith.constant 27 : index
    %236 = memref.load %arg4[%c27] : memref<96xf32, #tpu.memory_space<smem>>
    %237 = vector.broadcast %236 : f32 to vector<8x128xf32>
    %238 = arith.mulf %237, %77 : vector<8x128xf32>
    %c28 = arith.constant 28 : index
    %239 = memref.load %arg4[%c28] : memref<96xf32, #tpu.memory_space<smem>>
    %240 = vector.broadcast %239 : f32 to vector<8x128xf32>
    %241 = arith.mulf %240, %76 : vector<8x128xf32>
    %242 = arith.addf %238, %241 : vector<8x128xf32>
    %c29 = arith.constant 29 : index
    %243 = memref.load %arg4[%c29] : memref<96xf32, #tpu.memory_space<smem>>
    %244 = vector.broadcast %243 : f32 to vector<8x128xf32>
    %245 = arith.mulf %244, %78 : vector<8x128xf32>
    %246 = arith.addf %242, %245 : vector<8x128xf32>
    %247 = arith.addf %235, %246 : vector<8x128xf32>
    %c30 = arith.constant 30 : index
    %248 = memref.load %arg4[%c30] : memref<96xf32, #tpu.memory_space<smem>>
    %249 = vector.broadcast %248 : f32 to vector<8x128xf32>
    %250 = arith.mulf %249, %98 : vector<8x128xf32>
    %c31 = arith.constant 31 : index
    %251 = memref.load %arg4[%c31] : memref<96xf32, #tpu.memory_space<smem>>
    %252 = vector.broadcast %251 : f32 to vector<8x128xf32>
    %253 = arith.mulf %252, %97 : vector<8x128xf32>
    %254 = arith.addf %250, %253 : vector<8x128xf32>
    %c32 = arith.constant 32 : index
    %255 = memref.load %arg4[%c32] : memref<96xf32, #tpu.memory_space<smem>>
    %256 = vector.broadcast %255 : f32 to vector<8x128xf32>
    %257 = arith.mulf %256, %99 : vector<8x128xf32>
    %258 = arith.addf %254, %257 : vector<8x128xf32>
    %259 = arith.addf %247, %258 : vector<8x128xf32>
    %c33 = arith.constant 33 : index
    %260 = memref.load %arg4[%c33] : memref<96xf32, #tpu.memory_space<smem>>
    %261 = vector.broadcast %260 : f32 to vector<8x128xf32>
    %262 = arith.mulf %261, %119 : vector<8x128xf32>
    %c34 = arith.constant 34 : index
    %263 = memref.load %arg4[%c34] : memref<96xf32, #tpu.memory_space<smem>>
    %264 = vector.broadcast %263 : f32 to vector<8x128xf32>
    %265 = arith.mulf %264, %118 : vector<8x128xf32>
    %266 = arith.addf %262, %265 : vector<8x128xf32>
    %c35 = arith.constant 35 : index
    %267 = memref.load %arg4[%c35] : memref<96xf32, #tpu.memory_space<smem>>
    %268 = vector.broadcast %267 : f32 to vector<8x128xf32>
    %269 = arith.mulf %268, %120 : vector<8x128xf32>
    %270 = arith.addf %266, %269 : vector<8x128xf32>
    %271 = arith.addf %259, %270 : vector<8x128xf32>
    %c126_i32_42 = arith.constant 126 : i32
    %272 = tpu.dynamic_rotate %271 by %c126_i32_42 dim 1 : vector<8x128xf32>, i32 -> vector<8x128xf32>
    %273 = arith.maximumf %271, %272 : vector<8x128xf32>
    %274 = arith.mulf %273, %33 : vector<8x128xf32>
    %cst_43 = arith.constant dense<0.000000e+00> : vector<8xf32>
    %275 = vector.multi_reduction <add>, %274, %cst_43 [1] : vector<8x128xf32> to vector<8xf32>
    %276 = vector.shape_cast %275 : vector<8xf32> to vector<8x1xf32>
    %c36 = arith.constant 36 : index
    %277 = memref.load %arg4[%c36] : memref<96xf32, #tpu.memory_space<smem>>
    %278 = vector.broadcast %277 : f32 to vector<8x128xf32>
    %279 = arith.mulf %278, %56 : vector<8x128xf32>
    %c37 = arith.constant 37 : index
    %280 = memref.load %arg4[%c37] : memref<96xf32, #tpu.memory_space<smem>>
    %281 = vector.broadcast %280 : f32 to vector<8x128xf32>
    %282 = arith.mulf %281, %55 : vector<8x128xf32>
    %283 = arith.addf %279, %282 : vector<8x128xf32>
    %c38 = arith.constant 38 : index
    %284 = memref.load %arg4[%c38] : memref<96xf32, #tpu.memory_space<smem>>
    %285 = vector.broadcast %284 : f32 to vector<8x128xf32>
    %286 = arith.mulf %285, %57 : vector<8x128xf32>
    %287 = arith.addf %283, %286 : vector<8x128xf32>
    %c39 = arith.constant 39 : index
    %288 = memref.load %arg4[%c39] : memref<96xf32, #tpu.memory_space<smem>>
    %289 = vector.broadcast %288 : f32 to vector<8x128xf32>
    %290 = arith.mulf %289, %77 : vector<8x128xf32>
    %c40 = arith.constant 40 : index
    %291 = memref.load %arg4[%c40] : memref<96xf32, #tpu.memory_space<smem>>
    %292 = vector.broadcast %291 : f32 to vector<8x128xf32>
    %293 = arith.mulf %292, %76 : vector<8x128xf32>
    %294 = arith.addf %290, %293 : vector<8x128xf32>
    %c41 = arith.constant 41 : index
    %295 = memref.load %arg4[%c41] : memref<96xf32, #tpu.memory_space<smem>>
    %296 = vector.broadcast %295 : f32 to vector<8x128xf32>
    %297 = arith.mulf %296, %78 : vector<8x128xf32>
    %298 = arith.addf %294, %297 : vector<8x128xf32>
    %299 = arith.addf %287, %298 : vector<8x128xf32>
    %c42 = arith.constant 42 : index
    %300 = memref.load %arg4[%c42] : memref<96xf32, #tpu.memory_space<smem>>
    %301 = vector.broadcast %300 : f32 to vector<8x128xf32>
    %302 = arith.mulf %301, %98 : vector<8x128xf32>
    %c43 = arith.constant 43 : index
    %303 = memref.load %arg4[%c43] : memref<96xf32, #tpu.memory_space<smem>>
    %304 = vector.broadcast %303 : f32 to vector<8x128xf32>
    %305 = arith.mulf %304, %97 : vector<8x128xf32>
    %306 = arith.addf %302, %305 : vector<8x128xf32>
    %c44 = arith.constant 44 : index
    %307 = memref.load %arg4[%c44] : memref<96xf32, #tpu.memory_space<smem>>
    %308 = vector.broadcast %307 : f32 to vector<8x128xf32>
    %309 = arith.mulf %308, %99 : vector<8x128xf32>
    %310 = arith.addf %306, %309 : vector<8x128xf32>
    %311 = arith.addf %299, %310 : vector<8x128xf32>
    %c45 = arith.constant 45 : index
    %312 = memref.load %arg4[%c45] : memref<96xf32, #tpu.memory_space<smem>>
    %313 = vector.broadcast %312 : f32 to vector<8x128xf32>
    %314 = arith.mulf %313, %119 : vector<8x128xf32>
    %c46 = arith.constant 46 : index
    %315 = memref.load %arg4[%c46] : memref<96xf32, #tpu.memory_space<smem>>
    %316 = vector.broadcast %315 : f32 to vector<8x128xf32>
    %317 = arith.mulf %316, %118 : vector<8x128xf32>
    %318 = arith.addf %314, %317 : vector<8x128xf32>
    %c47 = arith.constant 47 : index
    %319 = memref.load %arg4[%c47] : memref<96xf32, #tpu.memory_space<smem>>
    %320 = vector.broadcast %319 : f32 to vector<8x128xf32>
    %321 = arith.mulf %320, %120 : vector<8x128xf32>
    %322 = arith.addf %318, %321 : vector<8x128xf32>
    %323 = arith.addf %311, %322 : vector<8x128xf32>
    %c126_i32_44 = arith.constant 126 : i32
    %324 = tpu.dynamic_rotate %323 by %c126_i32_44 dim 1 : vector<8x128xf32>, i32 -> vector<8x128xf32>
    %325 = arith.maximumf %323, %324 : vector<8x128xf32>
    %326 = arith.mulf %325, %33 : vector<8x128xf32>
    %cst_45 = arith.constant dense<0.000000e+00> : vector<8xf32>
    %327 = vector.multi_reduction <add>, %326, %cst_45 [1] : vector<8x128xf32> to vector<8xf32>
    %328 = vector.shape_cast %327 : vector<8xf32> to vector<8x1xf32>
    %c48 = arith.constant 48 : index
    %329 = memref.load %arg4[%c48] : memref<96xf32, #tpu.memory_space<smem>>
    %330 = vector.broadcast %329 : f32 to vector<8x128xf32>
    %331 = arith.mulf %330, %56 : vector<8x128xf32>
    %c49 = arith.constant 49 : index
    %332 = memref.load %arg4[%c49] : memref<96xf32, #tpu.memory_space<smem>>
    %333 = vector.broadcast %332 : f32 to vector<8x128xf32>
    %334 = arith.mulf %333, %55 : vector<8x128xf32>
    %335 = arith.addf %331, %334 : vector<8x128xf32>
    %c50 = arith.constant 50 : index
    %336 = memref.load %arg4[%c50] : memref<96xf32, #tpu.memory_space<smem>>
    %337 = vector.broadcast %336 : f32 to vector<8x128xf32>
    %338 = arith.mulf %337, %57 : vector<8x128xf32>
    %339 = arith.addf %335, %338 : vector<8x128xf32>
    %c51 = arith.constant 51 : index
    %340 = memref.load %arg4[%c51] : memref<96xf32, #tpu.memory_space<smem>>
    %341 = vector.broadcast %340 : f32 to vector<8x128xf32>
    %342 = arith.mulf %341, %77 : vector<8x128xf32>
    %c52 = arith.constant 52 : index
    %343 = memref.load %arg4[%c52] : memref<96xf32, #tpu.memory_space<smem>>
    %344 = vector.broadcast %343 : f32 to vector<8x128xf32>
    %345 = arith.mulf %344, %76 : vector<8x128xf32>
    %346 = arith.addf %342, %345 : vector<8x128xf32>
    %c53 = arith.constant 53 : index
    %347 = memref.load %arg4[%c53] : memref<96xf32, #tpu.memory_space<smem>>
    %348 = vector.broadcast %347 : f32 to vector<8x128xf32>
    %349 = arith.mulf %348, %78 : vector<8x128xf32>
    %350 = arith.addf %346, %349 : vector<8x128xf32>
    %351 = arith.addf %339, %350 : vector<8x128xf32>
    %c54 = arith.constant 54 : index
    %352 = memref.load %arg4[%c54] : memref<96xf32, #tpu.memory_space<smem>>
    %353 = vector.broadcast %352 : f32 to vector<8x128xf32>
    %354 = arith.mulf %353, %98 : vector<8x128xf32>
    %c55 = arith.constant 55 : index
    %355 = memref.load %arg4[%c55] : memref<96xf32, #tpu.memory_space<smem>>
    %356 = vector.broadcast %355 : f32 to vector<8x128xf32>
    %357 = arith.mulf %356, %97 : vector<8x128xf32>
    %358 = arith.addf %354, %357 : vector<8x128xf32>
    %c56 = arith.constant 56 : index
    %359 = memref.load %arg4[%c56] : memref<96xf32, #tpu.memory_space<smem>>
    %360 = vector.broadcast %359 : f32 to vector<8x128xf32>
    %361 = arith.mulf %360, %99 : vector<8x128xf32>
    %362 = arith.addf %358, %361 : vector<8x128xf32>
    %363 = arith.addf %351, %362 : vector<8x128xf32>
    %c57 = arith.constant 57 : index
    %364 = memref.load %arg4[%c57] : memref<96xf32, #tpu.memory_space<smem>>
    %365 = vector.broadcast %364 : f32 to vector<8x128xf32>
    %366 = arith.mulf %365, %119 : vector<8x128xf32>
    %c58 = arith.constant 58 : index
    %367 = memref.load %arg4[%c58] : memref<96xf32, #tpu.memory_space<smem>>
    %368 = vector.broadcast %367 : f32 to vector<8x128xf32>
    %369 = arith.mulf %368, %118 : vector<8x128xf32>
    %370 = arith.addf %366, %369 : vector<8x128xf32>
    %c59 = arith.constant 59 : index
    %371 = memref.load %arg4[%c59] : memref<96xf32, #tpu.memory_space<smem>>
    %372 = vector.broadcast %371 : f32 to vector<8x128xf32>
    %373 = arith.mulf %372, %120 : vector<8x128xf32>
    %374 = arith.addf %370, %373 : vector<8x128xf32>
    %375 = arith.addf %363, %374 : vector<8x128xf32>
    %c126_i32_46 = arith.constant 126 : i32
    %376 = tpu.dynamic_rotate %375 by %c126_i32_46 dim 1 : vector<8x128xf32>, i32 -> vector<8x128xf32>
    %377 = arith.maximumf %375, %376 : vector<8x128xf32>
    %378 = arith.mulf %377, %33 : vector<8x128xf32>
    %cst_47 = arith.constant dense<0.000000e+00> : vector<8xf32>
    %379 = vector.multi_reduction <add>, %378, %cst_47 [1] : vector<8x128xf32> to vector<8xf32>
    %380 = vector.shape_cast %379 : vector<8xf32> to vector<8x1xf32>
    %c60 = arith.constant 60 : index
    %381 = memref.load %arg4[%c60] : memref<96xf32, #tpu.memory_space<smem>>
    %382 = vector.broadcast %381 : f32 to vector<8x128xf32>
    %383 = arith.mulf %382, %56 : vector<8x128xf32>
    %c61 = arith.constant 61 : index
    %384 = memref.load %arg4[%c61] : memref<96xf32, #tpu.memory_space<smem>>
    %385 = vector.broadcast %384 : f32 to vector<8x128xf32>
    %386 = arith.mulf %385, %55 : vector<8x128xf32>
    %387 = arith.addf %383, %386 : vector<8x128xf32>
    %c62 = arith.constant 62 : index
    %388 = memref.load %arg4[%c62] : memref<96xf32, #tpu.memory_space<smem>>
    %389 = vector.broadcast %388 : f32 to vector<8x128xf32>
    %390 = arith.mulf %389, %57 : vector<8x128xf32>
    %391 = arith.addf %387, %390 : vector<8x128xf32>
    %c63 = arith.constant 63 : index
    %392 = memref.load %arg4[%c63] : memref<96xf32, #tpu.memory_space<smem>>
    %393 = vector.broadcast %392 : f32 to vector<8x128xf32>
    %394 = arith.mulf %393, %77 : vector<8x128xf32>
    %c64 = arith.constant 64 : index
    %395 = memref.load %arg4[%c64] : memref<96xf32, #tpu.memory_space<smem>>
    %396 = vector.broadcast %395 : f32 to vector<8x128xf32>
    %397 = arith.mulf %396, %76 : vector<8x128xf32>
    %398 = arith.addf %394, %397 : vector<8x128xf32>
    %c65 = arith.constant 65 : index
    %399 = memref.load %arg4[%c65] : memref<96xf32, #tpu.memory_space<smem>>
    %400 = vector.broadcast %399 : f32 to vector<8x128xf32>
    %401 = arith.mulf %400, %78 : vector<8x128xf32>
    %402 = arith.addf %398, %401 : vector<8x128xf32>
    %403 = arith.addf %391, %402 : vector<8x128xf32>
    %c66 = arith.constant 66 : index
    %404 = memref.load %arg4[%c66] : memref<96xf32, #tpu.memory_space<smem>>
    %405 = vector.broadcast %404 : f32 to vector<8x128xf32>
    %406 = arith.mulf %405, %98 : vector<8x128xf32>
    %c67 = arith.constant 67 : index
    %407 = memref.load %arg4[%c67] : memref<96xf32, #tpu.memory_space<smem>>
    %408 = vector.broadcast %407 : f32 to vector<8x128xf32>
    %409 = arith.mulf %408, %97 : vector<8x128xf32>
    %410 = arith.addf %406, %409 : vector<8x128xf32>
    %c68 = arith.constant 68 : index
    %411 = memref.load %arg4[%c68] : memref<96xf32, #tpu.memory_space<smem>>
    %412 = vector.broadcast %411 : f32 to vector<8x128xf32>
    %413 = arith.mulf %412, %99 : vector<8x128xf32>
    %414 = arith.addf %410, %413 : vector<8x128xf32>
    %415 = arith.addf %403, %414 : vector<8x128xf32>
    %c69 = arith.constant 69 : index
    %416 = memref.load %arg4[%c69] : memref<96xf32, #tpu.memory_space<smem>>
    %417 = vector.broadcast %416 : f32 to vector<8x128xf32>
    %418 = arith.mulf %417, %119 : vector<8x128xf32>
    %c70 = arith.constant 70 : index
    %419 = memref.load %arg4[%c70] : memref<96xf32, #tpu.memory_space<smem>>
    %420 = vector.broadcast %419 : f32 to vector<8x128xf32>
    %421 = arith.mulf %420, %118 : vector<8x128xf32>
    %422 = arith.addf %418, %421 : vector<8x128xf32>
    %c71 = arith.constant 71 : index
    %423 = memref.load %arg4[%c71] : memref<96xf32, #tpu.memory_space<smem>>
    %424 = vector.broadcast %423 : f32 to vector<8x128xf32>
    %425 = arith.mulf %424, %120 : vector<8x128xf32>
    %426 = arith.addf %422, %425 : vector<8x128xf32>
    %427 = arith.addf %415, %426 : vector<8x128xf32>
    %c126_i32_48 = arith.constant 126 : i32
    %428 = tpu.dynamic_rotate %427 by %c126_i32_48 dim 1 : vector<8x128xf32>, i32 -> vector<8x128xf32>
    %429 = arith.maximumf %427, %428 : vector<8x128xf32>
    %430 = arith.mulf %429, %33 : vector<8x128xf32>
    %cst_49 = arith.constant dense<0.000000e+00> : vector<8xf32>
    %431 = vector.multi_reduction <add>, %430, %cst_49 [1] : vector<8x128xf32> to vector<8xf32>
    %432 = vector.shape_cast %431 : vector<8xf32> to vector<8x1xf32>
    %c72 = arith.constant 72 : index
    %433 = memref.load %arg4[%c72] : memref<96xf32, #tpu.memory_space<smem>>
    %434 = vector.broadcast %433 : f32 to vector<8x128xf32>
    %435 = arith.mulf %434, %56 : vector<8x128xf32>
    %c73 = arith.constant 73 : index
    %436 = memref.load %arg4[%c73] : memref<96xf32, #tpu.memory_space<smem>>
    %437 = vector.broadcast %436 : f32 to vector<8x128xf32>
    %438 = arith.mulf %437, %55 : vector<8x128xf32>
    %439 = arith.addf %435, %438 : vector<8x128xf32>
    %c74 = arith.constant 74 : index
    %440 = memref.load %arg4[%c74] : memref<96xf32, #tpu.memory_space<smem>>
    %441 = vector.broadcast %440 : f32 to vector<8x128xf32>
    %442 = arith.mulf %441, %57 : vector<8x128xf32>
    %443 = arith.addf %439, %442 : vector<8x128xf32>
    %c75 = arith.constant 75 : index
    %444 = memref.load %arg4[%c75] : memref<96xf32, #tpu.memory_space<smem>>
    %445 = vector.broadcast %444 : f32 to vector<8x128xf32>
    %446 = arith.mulf %445, %77 : vector<8x128xf32>
    %c76 = arith.constant 76 : index
    %447 = memref.load %arg4[%c76] : memref<96xf32, #tpu.memory_space<smem>>
    %448 = vector.broadcast %447 : f32 to vector<8x128xf32>
    %449 = arith.mulf %448, %76 : vector<8x128xf32>
    %450 = arith.addf %446, %449 : vector<8x128xf32>
    %c77 = arith.constant 77 : index
    %451 = memref.load %arg4[%c77] : memref<96xf32, #tpu.memory_space<smem>>
    %452 = vector.broadcast %451 : f32 to vector<8x128xf32>
    %453 = arith.mulf %452, %78 : vector<8x128xf32>
    %454 = arith.addf %450, %453 : vector<8x128xf32>
    %455 = arith.addf %443, %454 : vector<8x128xf32>
    %c78 = arith.constant 78 : index
    %456 = memref.load %arg4[%c78] : memref<96xf32, #tpu.memory_space<smem>>
    %457 = vector.broadcast %456 : f32 to vector<8x128xf32>
    %458 = arith.mulf %457, %98 : vector<8x128xf32>
    %c79 = arith.constant 79 : index
    %459 = memref.load %arg4[%c79] : memref<96xf32, #tpu.memory_space<smem>>
    %460 = vector.broadcast %459 : f32 to vector<8x128xf32>
    %461 = arith.mulf %460, %97 : vector<8x128xf32>
    %462 = arith.addf %458, %461 : vector<8x128xf32>
    %c80 = arith.constant 80 : index
    %463 = memref.load %arg4[%c80] : memref<96xf32, #tpu.memory_space<smem>>
    %464 = vector.broadcast %463 : f32 to vector<8x128xf32>
    %465 = arith.mulf %464, %99 : vector<8x128xf32>
    %466 = arith.addf %462, %465 : vector<8x128xf32>
    %467 = arith.addf %455, %466 : vector<8x128xf32>
    %c81 = arith.constant 81 : index
    %468 = memref.load %arg4[%c81] : memref<96xf32, #tpu.memory_space<smem>>
    %469 = vector.broadcast %468 : f32 to vector<8x128xf32>
    %470 = arith.mulf %469, %119 : vector<8x128xf32>
    %c82 = arith.constant 82 : index
    %471 = memref.load %arg4[%c82] : memref<96xf32, #tpu.memory_space<smem>>
    %472 = vector.broadcast %471 : f32 to vector<8x128xf32>
    %473 = arith.mulf %472, %118 : vector<8x128xf32>
    %474 = arith.addf %470, %473 : vector<8x128xf32>
    %c83 = arith.constant 83 : index
    %475 = memref.load %arg4[%c83] : memref<96xf32, #tpu.memory_space<smem>>
    %476 = vector.broadcast %475 : f32 to vector<8x128xf32>
    %477 = arith.mulf %476, %120 : vector<8x128xf32>
    %478 = arith.addf %474, %477 : vector<8x128xf32>
    %479 = arith.addf %467, %478 : vector<8x128xf32>
    %c126_i32_50 = arith.constant 126 : i32
    %480 = tpu.dynamic_rotate %479 by %c126_i32_50 dim 1 : vector<8x128xf32>, i32 -> vector<8x128xf32>
    %481 = arith.maximumf %479, %480 : vector<8x128xf32>
    %482 = arith.mulf %481, %33 : vector<8x128xf32>
    %cst_51 = arith.constant dense<0.000000e+00> : vector<8xf32>
    %483 = vector.multi_reduction <add>, %482, %cst_51 [1] : vector<8x128xf32> to vector<8xf32>
    %484 = vector.shape_cast %483 : vector<8xf32> to vector<8x1xf32>
    %c84 = arith.constant 84 : index
    %485 = memref.load %arg4[%c84] : memref<96xf32, #tpu.memory_space<smem>>
    %486 = vector.broadcast %485 : f32 to vector<8x128xf32>
    %487 = arith.mulf %486, %56 : vector<8x128xf32>
    %c85 = arith.constant 85 : index
    %488 = memref.load %arg4[%c85] : memref<96xf32, #tpu.memory_space<smem>>
    %489 = vector.broadcast %488 : f32 to vector<8x128xf32>
    %490 = arith.mulf %489, %55 : vector<8x128xf32>
    %491 = arith.addf %487, %490 : vector<8x128xf32>
    %c86 = arith.constant 86 : index
    %492 = memref.load %arg4[%c86] : memref<96xf32, #tpu.memory_space<smem>>
    %493 = vector.broadcast %492 : f32 to vector<8x128xf32>
    %494 = arith.mulf %493, %57 : vector<8x128xf32>
    %495 = arith.addf %491, %494 : vector<8x128xf32>
    %c87 = arith.constant 87 : index
    %496 = memref.load %arg4[%c87] : memref<96xf32, #tpu.memory_space<smem>>
    %497 = vector.broadcast %496 : f32 to vector<8x128xf32>
    %498 = arith.mulf %497, %77 : vector<8x128xf32>
    %c88 = arith.constant 88 : index
    %499 = memref.load %arg4[%c88] : memref<96xf32, #tpu.memory_space<smem>>
    %500 = vector.broadcast %499 : f32 to vector<8x128xf32>
    %501 = arith.mulf %500, %76 : vector<8x128xf32>
    %502 = arith.addf %498, %501 : vector<8x128xf32>
    %c89 = arith.constant 89 : index
    %503 = memref.load %arg4[%c89] : memref<96xf32, #tpu.memory_space<smem>>
    %504 = vector.broadcast %503 : f32 to vector<8x128xf32>
    %505 = arith.mulf %504, %78 : vector<8x128xf32>
    %506 = arith.addf %502, %505 : vector<8x128xf32>
    %507 = arith.addf %495, %506 : vector<8x128xf32>
    %c90 = arith.constant 90 : index
    %508 = memref.load %arg4[%c90] : memref<96xf32, #tpu.memory_space<smem>>
    %509 = vector.broadcast %508 : f32 to vector<8x128xf32>
    %510 = arith.mulf %509, %98 : vector<8x128xf32>
    %c91 = arith.constant 91 : index
    %511 = memref.load %arg4[%c91] : memref<96xf32, #tpu.memory_space<smem>>
    %512 = vector.broadcast %511 : f32 to vector<8x128xf32>
    %513 = arith.mulf %512, %97 : vector<8x128xf32>
    %514 = arith.addf %510, %513 : vector<8x128xf32>
    %c92 = arith.constant 92 : index
    %515 = memref.load %arg4[%c92] : memref<96xf32, #tpu.memory_space<smem>>
    %516 = vector.broadcast %515 : f32 to vector<8x128xf32>
    %517 = arith.mulf %516, %99 : vector<8x128xf32>
    %518 = arith.addf %514, %517 : vector<8x128xf32>
    %519 = arith.addf %507, %518 : vector<8x128xf32>
    %c93 = arith.constant 93 : index
    %520 = memref.load %arg4[%c93] : memref<96xf32, #tpu.memory_space<smem>>
    %521 = vector.broadcast %520 : f32 to vector<8x128xf32>
    %522 = arith.mulf %521, %119 : vector<8x128xf32>
    %c94 = arith.constant 94 : index
    %523 = memref.load %arg4[%c94] : memref<96xf32, #tpu.memory_space<smem>>
    %524 = vector.broadcast %523 : f32 to vector<8x128xf32>
    %525 = arith.mulf %524, %118 : vector<8x128xf32>
    %526 = arith.addf %522, %525 : vector<8x128xf32>
    %c95 = arith.constant 95 : index
    %527 = memref.load %arg4[%c95] : memref<96xf32, #tpu.memory_space<smem>>
    %528 = vector.broadcast %527 : f32 to vector<8x128xf32>
    %529 = arith.mulf %528, %120 : vector<8x128xf32>
    %530 = arith.addf %526, %529 : vector<8x128xf32>
    %531 = arith.addf %519, %530 : vector<8x128xf32>
    %c126_i32_52 = arith.constant 126 : i32
    %532 = tpu.dynamic_rotate %531 by %c126_i32_52 dim 1 : vector<8x128xf32>, i32 -> vector<8x128xf32>
    %533 = arith.maximumf %531, %532 : vector<8x128xf32>
    %534 = arith.mulf %533, %33 : vector<8x128xf32>
    %cst_53 = arith.constant dense<0.000000e+00> : vector<8xf32>
    %535 = vector.multi_reduction <add>, %534, %cst_53 [1] : vector<8x128xf32> to vector<8xf32>
    %536 = vector.shape_cast %535 : vector<8xf32> to vector<8x1xf32>
    %537 = tpu.concatenate %172, %224, %276, %328, %380, %432, %484, %536 in 1 : vector<8x1xf32>, vector<8x1xf32>, vector<8x1xf32>, vector<8x1xf32>, vector<8x1xf32>, vector<8x1xf32>, vector<8x1xf32>, vector<8x1xf32> -> vector<8x8xf32>
    %c0_54 = arith.constant 0 : index
    %c0_55 = arith.constant 0 : index
    %538 = vector.load %arg5[%c0_54, %c0_55] : memref<1x8xf32, #tpu.memory_space<vmem>>, vector<1x8xf32>
    %539 = vector.broadcast %538 : vector<1x8xf32> to vector<8x8xf32>
    %540 = arith.addf %537, %539 : vector<8x8xf32>
    %c0_56 = arith.constant 0 : index
    %c0_57 = arith.constant 0 : index
    %541 = vector.load %arg6[%c0_56, %c0_57] : memref<8x64xf32, #tpu.memory_space<vmem>>, vector<8x64xf32>
    %cst_58 = arith.constant dense<0.000000e+00> : vector<8x64xf32>
    %542 = tpu.matmul %540, %541, %cst_58 {dimension_numbers = #tpu.dot_dimension_numbers<[1], [0], [0], [1], [0, 0, 1, 1], [], []>} : vector<8x8xf32>, vector<8x64xf32>, vector<8x64xf32> -> vector<8x64xf32>
    %c0_59 = arith.constant 0 : index
    %c0_60 = arith.constant 0 : index
    %543 = vector.load %arg7[%c0_59, %c0_60] : memref<1x64xf32, #tpu.memory_space<vmem>>, vector<1x64xf32>
    %544 = vector.broadcast %543 : vector<1x64xf32> to vector<8x64xf32>
    %545 = arith.addf %542, %544 : vector<8x64xf32>
    %cst_61 = arith.constant 0.000000e+00 : f32
    %546 = vector.broadcast %cst_61 : f32 to vector<8x64xf32>
    %547 = arith.maximumf %545, %546 : vector<8x64xf32>
    %c0_62 = arith.constant 0 : index
    %c0_63 = arith.constant 0 : index
    %548 = vector.load %arg8[%c0_62, %c0_63] : memref<64x2xf32, #tpu.memory_space<vmem>>, vector<64x2xf32>
    %cst_64 = arith.constant dense<0.000000e+00> : vector<8x2xf32>
    %549 = tpu.matmul %547, %548, %cst_64 {dimension_numbers = #tpu.dot_dimension_numbers<[1], [0], [0], [1], [0, 0, 1, 1], [], []>} : vector<8x64xf32>, vector<64x2xf32>, vector<8x2xf32> -> vector<8x2xf32>
    %c0_65 = arith.constant 0 : index
    %c0_66 = arith.constant 0 : index
    %550 = vector.load %arg9[%c0_65, %c0_66] : memref<1x2xf32, #tpu.memory_space<vmem>>, vector<1x2xf32>
    %551 = vector.broadcast %550 : vector<1x2xf32> to vector<8x2xf32>
    %552 = arith.addf %549, %551 : vector<8x2xf32>
    %c0_67 = arith.constant 0 : index
    %c0_68 = arith.constant 0 : index
    %553 = vector.load %arg10[%c0_67, %c0_68] : memref<8x2xf32, #tpu.memory_space<vmem>>, vector<8x2xf32>
    tpu.vector_store %arg10[%c0_67, %c0_68], %552 {strides = array<i32>} : memref<8x2xf32, #tpu.memory_space<vmem>>, vector<8x2xf32>,
    return
  }
  func.func @transform_0(%arg0: i32) -> (i32, i32) {
    %c0_i32 = arith.constant 0 : i32
    %c0_i32_0 = arith.constant 0 : i32
    return %arg0, %c0_i32 : i32, i32
  }
  func.func @transform_1(%arg0: i32) -> i32 {
    %c0_i32 = arith.constant 0 : i32
    %c0_i32_0 = arith.constant 0 : i32
    return %c0_i32 : i32
  }
  func.func @transform_2(%arg0: i32) -> i32 {
    %c0_i32 = arith.constant 0 : i32
    %c0_i32_0 = arith.constant 0 : i32
    return %c0_i32 : i32
  }
  func.func @transform_3(%arg0: i32) -> i32 {
    %c0_i32 = arith.constant 0 : i32
    %c0_i32_0 = arith.constant 0 : i32
    return %c0_i32 : i32
  }
  func.func @transform_4(%arg0: i32) -> (i32, i32) {
    %c0_i32 = arith.constant 0 : i32
    %c0_i32_0 = arith.constant 0 : i32
    %c0_i32_1 = arith.constant 0 : i32
    return %c0_i32, %c0_i32_0 : i32, i32
  }
  func.func @transform_5(%arg0: i32) -> (i32, i32) {
    %c0_i32 = arith.constant 0 : i32
    %c0_i32_0 = arith.constant 0 : i32
    %c0_i32_1 = arith.constant 0 : i32
    return %c0_i32, %c0_i32_0 : i32, i32
  }
  func.func @transform_6(%arg0: i32) -> (i32, i32) {
    %c0_i32 = arith.constant 0 : i32
    %c0_i32_0 = arith.constant 0 : i32
    %c0_i32_1 = arith.constant 0 : i32
    return %c0_i32, %c0_i32_0 : i32, i32
  }
  func.func @transform_7(%arg0: i32) -> (i32, i32) {
    %c0_i32 = arith.constant 0 : i32
    %c0_i32_0 = arith.constant 0 : i32
    %c0_i32_1 = arith.constant 0 : i32
    return %c0_i32, %c0_i32_0 : i32, i32
  }
  func.func @transform_8(%arg0: i32) -> (i32, i32) {
    %c0_i32 = arith.constant 0 : i32
    %c0_i32_0 = arith.constant 0 : i32
    %c0_i32_1 = arith.constant 0 : i32
    return %c0_i32, %c0_i32_0 : i32, i32
  }
  func.func @transform_9(%arg0: i32) -> (i32, i32) {
    %c0_i32 = arith.constant 0 : i32
    %c0_i32_0 = arith.constant 0 : i32
    return %arg0, %c0_i32 : i32, i32
  }
}

</mosaic_0001>

<llo_original>
// kernel: tpu_custom_call.1
$region0: #{tpu_custom_call.1}
  #allocation0 [shape = 'u32[]', space=smem, size = 0x4, offset = 0x4, fixed_abs, tag = 'smem constant byte address 0x4 - core index']
  #allocation1 [shape = 'u32[144,128]{1,0:T(1,128)}', space=vmem, size = 0x12000, scoped, tag = 'internal scratch']
  %s0 = inlined_call_operand.hbm [shape: f32[8,128], index: 0, kind: input, shape index: {}]
  %s1 = inlined_call_operand.hbm [shape: f32[12], index: 1, kind: input, shape index: {}]
  %s2 = inlined_call_operand.hbm [shape: f32[4], index: 2, kind: input, shape index: {}]
  %s3 = inlined_call_operand.hbm [shape: f32[96], index: 3, kind: input, shape index: {}]
  %s4 = inlined_call_operand.hbm [shape: f32[1,8], index: 4, kind: input, shape index: {}]
  %s5 = inlined_call_operand.hbm [shape: f32[8,64], index: 5, kind: input, shape index: {}]
  %s6 = inlined_call_operand.hbm [shape: f32[1,64], index: 6, kind: input, shape index: {}]
  %s7 = inlined_call_operand.hbm [shape: f32[64,2], index: 7, kind: input, shape index: {}]
  %s8 = inlined_call_operand.hbm [shape: f32[1,2], index: 8, kind: input, shape index: {}]
  %s9 = inlined_call_operand.hbm [shape: f32[8,2], index: 9, kind: output, shape index: {}]
  %s10 = sld [smem:[#allocation0]]
  $region82: #{tpu_custom_call.1} parent=0
    _
  %s12 = ssub.s32 1, %s10
  %s13 = scalar_select 0, %s12, %s10
  $region1: #{tpu_custom_call.1} parent=0
    #allocation2 [shape = 'u8[4096]{0}', space=vmem, size = 0x1000, scoped, tag = 'input window, operand 0, single buffered']
    #allocation3 [shape = 's32[1]{0}', space=sflag, size = 0x4, scoped, tag = 'scoped memory for tpu_custom_call.1']
    #allocation4 [shape = 's32[1]{0}', space=sflag, size = 0x4, scoped, tag = 'scoped memory for tpu_custom_call.1']
    #allocation5 [shape = 's32[1]{0}', space=sflag, size = 0x4, scoped, tag = 'scoped memory for tpu_custom_call.1']
    #allocation6 [shape = 'u8[512]{0}', space=smem, size = 0x200, scoped, tag = 'input window, operand 1, single buffered']
    #allocation7 [shape = 'u8[512]{0}', space=smem, size = 0x200, scoped, tag = 'input window, operand 2, single buffered']
    #allocation8 [shape = 's32[1]{0}', space=sflag, size = 0x4, scoped, tag = 'scoped memory for tpu_custom_call.1']
    #allocation9 [shape = 'u8[512]{0}', space=smem, size = 0x200, scoped, tag = 'input window, operand 3, single buffered']
    #allocation10 [shape = 'u8[512]{0}', space=vmem, size = 0x400, scoped, tag = 'input window, operand 4, single buffered']
    #allocation11 [shape = 's32[1]{0}', space=sflag, size = 0x4, scoped, tag = 'scoped memory for tpu_custom_call.1']
    #allocation12 [shape = 'u8[4096]{0}', space=vmem, size = 0x1000, scoped, tag = 'input window, operand 5, single buffered']
    #allocation13 [shape = 'u8[512]{0}', space=vmem, size = 0x400, scoped, tag = 'input window, operand 6, single buffered']
    #allocation14 [shape = 's32[1]{0}', space=sflag, size = 0x4, scoped, tag = 'scoped memory for tpu_custom_call.1']
    #allocation15 [shape = 'u8[32768]{0}', space=vmem, size = 0x8000, scoped, tag = 'input window, operand 7, single buffered']
    #allocation16 [shape = 'u8[512]{0}', space=vmem, size = 0x400, scoped, tag = 'input window, operand 8, single buffered']
    #allocation17 [shape = 's32[1]{0}', space=sflag, size = 0x4, scoped, tag = 'scoped memory for tpu_custom_call.1']
    #allocation18 [shape = 'u8[4096]{0}', space=vmem, size = 0x1000, scoped, tag = 'output window, operand 0, single buffered']
    %14 = vsyncpa [#allocation3], 0
    %15 = vsyncpa [#allocation5], 0
    %16 = vsyncpa [#allocation8], 0
    %17 = vsyncpa [#allocation11], 0
    %18 = vsyncpa [#allocation14], 0
    %19 = vsyncpa [#allocation17], 0
    %20 = vsyncpa [#allocation4], 0
    // Predicated region
    $region2: #{tpu_custom_call.1} parent=1 // pred_check
      _
    $region3: #{tpu_custom_call.1} parent=1 // pred_check_branch
      %22 = sbr.rel (0) target = $region5
    $region4: #{tpu_custom_call.1} parent=1 // pred_region
      %s24 = ssub.s32 128, 128
      %25 = vsyncadd [#allocation3], %s24
      %s27 = sshll.u32 [#allocation2], 4
      %s28 = int_to_ptr.vmem [resolvable:$true] %s27
      %30 = dma.hbm_to_vmem [thread:$0]  %s0, 128, %s28, [#allocation3]
    $region5: #{tpu_custom_call.1} parent=1 // pred_fallthru
      _
    // Predicated region
    $region6: #{tpu_custom_call.1} parent=1 // pred_check
      _
    $region7: #{tpu_custom_call.1} parent=1 // pred_check_branch
      %32 = sbr.rel (0) target = $region9
    $region8: #{tpu_custom_call.1} parent=1 // pred_region
      %s34 = ssub.s32 16, 16
      %35 = vsyncadd [#allocation5], %s34
      %38 = dma.hbm_to_smem %s1, 16, [#allocation6], [#allocation5]
    $region9: #{tpu_custom_call.1} parent=1 // pred_fallthru
      _
    // Predicated region
    $region10: #{tpu_custom_call.1} parent=1 // pred_check
      _
    $region11: #{tpu_custom_call.1} parent=1 // pred_check_branch
      %40 = sbr.rel (0) target = $region13
    $region12: #{tpu_custom_call.1} parent=1 // pred_region
      %s42 = ssub.s32 16, 16
      %43 = vsyncadd [#allocation8], %s42
      %46 = dma.hbm_to_smem %s2, 16, [#allocation7], [#allocation8]
    $region13: #{tpu_custom_call.1} parent=1 // pred_fallthru
      _
    // Predicated region
    $region14: #{tpu_custom_call.1} parent=1 // pred_check
      _
    $region15: #{tpu_custom_call.1} parent=1 // pred_check_branch
      %48 = sbr.rel (0) target = $region17
    $region16: #{tpu_custom_call.1} parent=1 // pred_region
      %s50 = ssub.s32 16, 16
      %51 = vsyncadd [#allocation8], %s50
      %54 = dma.hbm_to_smem %s3, 16, [#allocation9], [#allocation8]
    $region17: #{tpu_custom_call.1} parent=1 // pred_fallthru
      _
    // Predicated region
    $region18: #{tpu_custom_call.1} parent=1 // pred_check
      _
    $region19: #{tpu_custom_call.1} parent=1 // pred_check_branch
      %56 = sbr.rel (0) target = $region21
    $region20: #{tpu_custom_call.1} parent=1 // pred_region
      %s58 = ssub.s32 16, 16
      %59 = vsyncadd [#allocation11], %s58
      %s61 = sshll.u32 [#allocation10], 4
      %s62 = int_to_ptr.vmem [resolvable:$true] %s61
      %64 = dma.hbm_to_vmem [thread:$0]  %s4, 16, %s62, [#allocation11]
    $region21: #{tpu_custom_call.1} parent=1 // pred_fallthru
      _
    // Predicated region
    $region22: #{tpu_custom_call.1} parent=1 // pred_check
      _
    $region23: #{tpu_custom_call.1} parent=1 // pred_check_branch
      %66 = sbr.rel (0) target = $region25
    $region24: #{tpu_custom_call.1} parent=1 // pred_region
      %s68 = ssub.s32 128, 128
      %69 = vsyncadd [#allocation11], %s68
      %s71 = sshll.u32 [#allocation12], 4
      %s72 = int_to_ptr.vmem [resolvable:$true] %s71
      %74 = dma.hbm_to_vmem [thread:$0]  %s5, 128, %s72, [#allocation11]
    $region25: #{tpu_custom_call.1} parent=1 // pred_fallthru
      _
    // Predicated region
    $region26: #{tpu_custom_call.1} parent=1 // pred_check
      _
    $region27: #{tpu_custom_call.1} parent=1 // pred_check_branch
      %76 = sbr.rel (0) target = $region29
    $region28: #{tpu_custom_call.1} parent=1 // pred_region
      %s78 = ssub.s32 16, 16
      %79 = vsyncadd [#allocation14], %s78
      %s81 = sshll.u32 [#allocation13], 4
      %s82 = int_to_ptr.vmem [resolvable:$true] %s81
      %84 = dma.hbm_to_vmem [thread:$0]  %s6, 16, %s82, [#allocation14]
    $region29: #{tpu_custom_call.1} parent=1 // pred_fallthru
      _
    // Predicated region
    $region30: #{tpu_custom_call.1} parent=1 // pred_check
      _
    $region31: #{tpu_custom_call.1} parent=1 // pred_check_branch
      %86 = sbr.rel (0) target = $region33
    $region32: #{tpu_custom_call.1} parent=1 // pred_region
      %s88 = ssub.s32 1024, 1024
      %89 = vsyncadd [#allocation14], %s88
      %s90 = sshll.u32 [#allocation15], 4
      %s91 = int_to_ptr.vmem [resolvable:$true] %s90
      %96 = dma.hbm_to_vmem [thread:$0]  %s7, 1024, %s91, [#allocation14], 128, 128, 8
    $region33: #{tpu_custom_call.1} parent=1 // pred_fallthru
      _
    // Predicated region
    $region34: #{tpu_custom_call.1} parent=1 // pred_check
      _
    $region35: #{tpu_custom_call.1} parent=1 // pred_check_branch
      %98 = sbr.rel (0) target = $region37
    $region36: #{tpu_custom_call.1} parent=1 // pred_region
      %s100 = ssub.s32 16, 16
      %101 = vsyncadd [#allocation17], %s100
      %s103 = sshll.u32 [#allocation16], 4
      %s104 = int_to_ptr.vmem [resolvable:$true] %s103
      %106 = dma.hbm_to_vmem [thread:$0]  %s8, 16, %s104, [#allocation17]
    $region37: #{tpu_custom_call.1} parent=1 // pred_fallthru
      _
    // Predicated region
    $region38: #{tpu_custom_call.1} parent=1 // pred_check
      _
    $region39: #{tpu_custom_call.1} parent=1 // pred_check_branch
      %108 = sbr.rel (0) target = $region41
    $region40: #{tpu_custom_call.1} parent=1 // pred_region
      %109 = dma.done [#allocation3], 128
    $region41: #{tpu_custom_call.1} parent=1 // pred_fallthru
      _
    // Predicated region
    $region42: #{tpu_custom_call.1} parent=1 // pred_check
      _
    $region43: #{tpu_custom_call.1} parent=1 // pred_check_branch
      %111 = sbr.rel (0) target = $region45
    $region44: #{tpu_custom_call.1} parent=1 // pred_region
      %112 = dma.done [#allocation5], 16
    $region45: #{tpu_custom_call.1} parent=1 // pred_fallthru
      _
    // Predicated region
    $region46: #{tpu_custom_call.1} parent=1 // pred_check
      _
    $region47: #{tpu_custom_call.1} parent=1 // pred_check_branch
      %114 = sbr.rel (0) target = $region49
    $region48: #{tpu_custom_call.1} parent=1 // pred_region
      %115 = dma.done [#allocation8], 16
    $region49: #{tpu_custom_call.1} parent=1 // pred_fallthru
      _
    // Predicated region
    $region50: #{tpu_custom_call.1} parent=1 // pred_check
      _
    $region51: #{tpu_custom_call.1} parent=1 // pred_check_branch
      %117 = sbr.rel (0) target = $region53
    $region52: #{tpu_custom_call.1} parent=1 // pred_region
      %118 = dma.done [#allocation8], 16
    $region53: #{tpu_custom_call.1} parent=1 // pred_fallthru
      _
    // Predicated region
    $region54: #{tpu_custom_call.1} parent=1 // pred_check
      _
    $region55: #{tpu_custom_call.1} parent=1 // pred_check_branch
      %120 = sbr.rel (0) target = $region57
    $region56: #{tpu_custom_call.1} parent=1 // pred_region
      %121 = dma.done [#allocation11], 16
    $region57: #{tpu_custom_call.1} parent=1 // pred_fallthru
      _
    // Predicated region
    $region58: #{tpu_custom_call.1} parent=1 // pred_check
      _
    $region59: #{tpu_custom_call.1} parent=1 // pred_check_branch
      %123 = sbr.rel (0) target = $region61
    $region60: #{tpu_custom_call.1} parent=1 // pred_region
      %124 = dma.done [#allocation11], 128
    $region61: #{tpu_custom_call.1} parent=1 // pred_fallthru
      _
    // Predicated region
    $region62: #{tpu_custom_call.1} parent=1 // pred_check
      _
    $region63: #{tpu_custom_call.1} parent=1 // pred_check_branch
      %126 = sbr.rel (0) target = $region65
    $region64: #{tpu_custom_call.1} parent=1 // pred_region
      %127 = dma.done [#allocation14], 16
    $region65: #{tpu_custom_call.1} parent=1 // pred_fallthru
      _
    // Predicated region
    $region66: #{tpu_custom_call.1} parent=1 // pred_check
      _
    $region67: #{tpu_custom_call.1} parent=1 // pred_check_branch
      %129 = sbr.rel (0) target = $region69
    $region68: #{tpu_custom_call.1} parent=1 // pred_region
      %130 = dma.done [#allocation14], 1024
    $region69: #{tpu_custom_call.1} parent=1 // pred_fallthru
      _
    // Predicated region
    $region70: #{tpu_custom_call.1} parent=1 // pred_check
      _
    $region71: #{tpu_custom_call.1} parent=1 // pred_check_branch
      %132 = sbr.rel (0) target = $region73
    $region72: #{tpu_custom_call.1} parent=1 // pred_region
      %133 = dma.done [#allocation17], 16
    $region73: #{tpu_custom_call.1} parent=1 // pred_fallthru
      _
    %134 = sfence
    %v135 = vlaneseq
    %v136 = vand.u32 %v135, 127
    %vm137 = vcmp.lt.s32.totalorder %v136, 16
    %v138 = vsel %vm137, 1, 0
    %v139 = vcvt.s32.f32 %v138
    %vm140 = vcmp.lt.s32.totalorder %v136, 0
    %v141 = vsub.s32 0, %v136
    %v142 = vsel %vm140, %v141, %v136
    %v143 = vshrl.u32 %v142, 2
    %v144 = vand.u32 %v142, 3
    %v145 = vsub.s32 0, %v144
    %v146 = vsel %vm140, %v145, %v144
    %vm147 = vcmp.ne.s32.totalorder %v146, 0
    %vm148 = vcmp.lt.s32.totalorder %v146, 0
    %vm149 = vmand %vm148, %vm147
    %v150 = vadd.s32 %v146, 4
    %v151 = vsel %vm149, %v150, %v146
    %vm152 = vcmp.eq.s32.totalorder %v151, 0
    %vm153 = vmand %vm152, %vm137
    %v154 = vsel %vm153, 1, 0
    %v155 = vcvt.s32.f32 %v154
    %v156 = vmul.f32 %v155, 0.25
    %v157 = vld [vmem:[#allocation2] sm:$0xff]
    %158 = vrot.lane.b32.xlu0 %v157, 1
    %v159 = vpop.permute.xlu0 %158
    %160 = vrot.lane.b32.xlu0 %v157, 127
    %v161 = vpop.permute.xlu0 %160
    %s162 = sld [smem:[#allocation6]]
    %v163 = vstv %s162
    %v164 = vmul.f32 %v163, %v159
    %s165 = sld [smem:[#allocation6 + $0x1]]
    %v166 = vstv %s165
    %v167 = vmul.f32 %v166, %v157
    %v168 = vadd.f32 %v164, %v167
    %s169 = sld [smem:[#allocation6 + $0x2]]
    %v170 = vstv %s169
    %v171 = vmul.f32 %v170, %v161
    %v172 = vadd.f32 %v168, %v171
    %s173 = sld [smem:[#allocation7]]
    %v174 = vstv %s173
    %v175 = vadd.f32 %v172, %v174
    %v176 = vmax.f32 %v175, 0.0
    %v177 = vmul.f32 %v176, %v139
    %178 = vrot.lane.b32.xlu0 %v177, 127
    %v179 = vpop.permute.xlu0 %178
    %v180 = vmax.f32 %v177, %v179
    %181 = vrot.lane.b32.xlu0 %v180, 2
    %v182 = vpop.permute.xlu0 %181
    %183 = vrot.lane.b32.xlu0 %v180, 126
    %v184 = vpop.permute.xlu0 %183
    %s185 = sld [smem:[#allocation6 + $0x3]]
    %v186 = vstv %s185
    %v187 = vmul.f32 %v186, %v159
    %s188 = sld [smem:[#allocation6 + $0x4]]
    %v189 = vstv %s188
    %v190 = vmul.f32 %v189, %v157
    %v191 = vadd.f32 %v187, %v190
    %s192 = sld [smem:[#allocation6 + $0x5]]
    %v193 = vstv %s192
    %v194 = vmul.f32 %v193, %v161
    %v195 = vadd.f32 %v191, %v194
    %s196 = sld [smem:[#allocation7 + $0x1]]
    %v197 = vstv %s196
    %v198 = vadd.f32 %v195, %v197
    %v199 = vmax.f32 %v198, 0.0
    %v200 = vmul.f32 %v199, %v139
    %201 = vrot.lane.b32.xlu0 %v200, 127
    %v202 = vpop.permute.xlu0 %201
    %v203 = vmax.f32 %v200, %v202
    %204 = vrot.lane.b32.xlu0 %v203, 2
    %v205 = vpop.permute.xlu0 %204
    %206 = vrot.lane.b32.xlu0 %v203, 126
    %v207 = vpop.permute.xlu0 %206
    %s208 = sld [smem:[#allocation6 + $0x6]]
    %v209 = vstv %s208
    %v210 = vmul.f32 %v209, %v159
    %s211 = sld [smem:[#allocation6 + $0x7]]
    %v212 = vstv %s211
    %v213 = vmul.f32 %v212, %v157
    %v214 = vadd.f32 %v210, %v213
    %s215 = sld [smem:[#allocation6 + $0x8]]
    %v216 = vstv %s215
    %v217 = vmul.f32 %v216, %v161
    %v218 = vadd.f32 %v214, %v217
    %s219 = sld [smem:[#allocation7 + $0x2]]
    %v220 = vstv %s219
    %v221 = vadd.f32 %v218, %v220
    %v222 = vmax.f32 %v221, 0.0
    %v223 = vmul.f32 %v222, %v139
    %224 = vrot.lane.b32.xlu0 %v223, 127
    %v225 = vpop.permute.xlu0 %224
    %v226 = vmax.f32 %v223, %v225
    %227 = vrot.lane.b32.xlu0 %v226, 2
    %v228 = vpop.permute.xlu0 %227
    %229 = vrot.lane.b32.xlu0 %v226, 126
    %v230 = vpop.permute.xlu0 %229
    %s231 = sld [smem:[#allocation6 + $0x9]]
    %v232 = vstv %s231
    %v233 = vmul.f32 %v232, %v159
    %s234 = sld [smem:[#allocation6 + $0xa]]
    %v235 = vstv %s234
    %v236 = vmul.f32 %v235, %v157
    %v237 = vadd.f32 %v233, %v236
    %s238 = sld [smem:[#allocation6 + $0xb]]
    %v239 = vstv %s238
    %v240 = vmul.f32 %v239, %v161
    %v241 = vadd.f32 %v237, %v240
    %s242 = sld [smem:[#allocation7 + $0x3]]
    %v243 = vstv %s242
    %v244 = vadd.f32 %v241, %v243
    %v245 = vmax.f32 %v244, 0.0
    %v246 = vmul.f32 %v245, %v139
    %247 = vrot.lane.b32.xlu0 %v246, 127
    %v248 = vpop.permute.xlu0 %247
    %v249 = vmax.f32 %v246, %v248
    %250 = vrot.lane.b32.xlu0 %v249, 2
    %v251 = vpop.permute.xlu0 %250
    %252 = vrot.lane.b32.xlu0 %v249, 126
    %v253 = vpop.permute.xlu0 %252
    %s254 = sld [smem:[#allocation9]]
    %v255 = vstv %s254
    %v256 = vmul.f32 %v255, %v182
    %s257 = sld [smem:[#allocation9 + $0x1]]
    %v258 = vstv %s257
    %v259 = vmul.f32 %v258, %v180
    %v260 = vadd.f32 %v256, %v259
    %s261 = sld [smem:[#allocation9 + $0x2]]
    %v262 = vstv %s261
    %v263 = vmul.f32 %v262, %v184
    %v264 = vadd.f32 %v260, %v263
    %s265 = sld [smem:[#allocation9 + $0x3]]
    %v266 = vstv %s265
    %v267 = vmul.f32 %v266, %v205
    %s268 = sld [smem:[#allocation9 + $0x4]]
    %v269 = vstv %s268
    %v270 = vmul.f32 %v269, %v203
    %v271 = vadd.f32 %v267, %v270
    %s272 = sld [smem:[#allocation9 + $0x5]]
    %v273 = vstv %s272
    %v274 = vmul.f32 %v273, %v207
    %v275 = vadd.f32 %v271, %v274
    %v276 = vadd.f32 %v264, %v275
    %s277 = sld [smem:[#allocation9 + $0x6]]
    %v278 = vstv %s277
    %v279 = vmul.f32 %v278, %v228
    %s280 = sld [smem:[#allocation9 + $0x7]]
    %v281 = vstv %s280
    %v282 = vmul.f32 %v281, %v226
    %v283 = vadd.f32 %v279, %v282
    %s284 = sld [smem:[#allocation9 + $0x8]]
    %v285 = vstv %s284
    %v286 = vmul.f32 %v285, %v230
    %v287 = vadd.f32 %v283, %v286
    %v288 = vadd.f32 %v276, %v287
    %s289 = sld [smem:[#allocation9 + $0x9]]
    %v290 = vstv %s289
    %v291 = vmul.f32 %v290, %v251
    %s292 = sld [smem:[#allocation9 + $0xa]]
    %v293 = vstv %s292
    %v294 = vmul.f32 %v293, %v249
    %v295 = vadd.f32 %v291, %v294
    %s296 = sld [smem:[#allocation9 + $0xb]]
    %v297 = vstv %s296
    %v298 = vmul.f32 %v297, %v253
    %v299 = vadd.f32 %v295, %v298
    %v300 = vadd.f32 %v288, %v299
    %301 = vrot.lane.b32.xlu0 %v300, 126
    %v302 = vpop.permute.xlu0 %301
    %v303 = vmax.f32 %v300, %v302
    %v304 = vmul.f32 %v303, %v156
    %305 = vadd.xlane.f32.xlu0 %v304
    %v306 = vpop.xlane.xlu0 %305
    %s307 = sld [smem:[#allocation9 + $0xc]]
    %v308 = vstv %s307
    %v309 = vmul.f32 %v308, %v182
    %s310 = sld [smem:[#allocation9 + $0xd]]
    %v311 = vstv %s310
    %v312 = vmul.f32 %v311, %v180
    %v313 = vadd.f32 %v309, %v312
    %s314 = sld [smem:[#allocation9 + $0xe]]
    %v315 = vstv %s314
    %v316 = vmul.f32 %v315, %v184
    %v317 = vadd.f32 %v313, %v316
    %s318 = sld [smem:[#allocation9 + $0xf]]
    %v319 = vstv %s318
    %v320 = vmul.f32 %v319, %v205
    %s321 = sld [smem:[#allocation9 + $0x10]]
    %v322 = vstv %s321
    %v323 = vmul.f32 %v322, %v203
    %v324 = vadd.f32 %v320, %v323
    %s325 = sld [smem:[#allocation9 + $0x11]]
    %v326 = vstv %s325
    %v327 = vmul.f32 %v326, %v207
    %v328 = vadd.f32 %v324, %v327
    %v329 = vadd.f32 %v317, %v328
    %s330 = sld [smem:[#allocation9 + $0x12]]
    %v331 = vstv %s330
    %v332 = vmul.f32 %v331, %v228
    %s333 = sld [smem:[#allocation9 + $0x13]]
    %v334 = vstv %s333
    %v335 = vmul.f32 %v334, %v226
    %v336 = vadd.f32 %v332, %v335
    %s337 = sld [smem:[#allocation9 + $0x14]]
    %v338 = vstv %s337
    %v339 = vmul.f32 %v338, %v230
    %v340 = vadd.f32 %v336, %v339
    %v341 = vadd.f32 %v329, %v340
    %s342 = sld [smem:[#allocation9 + $0x15]]
    %v343 = vstv %s342
    %v344 = vmul.f32 %v343, %v251
    %s345 = sld [smem:[#allocation9 + $0x16]]
    %v346 = vstv %s345
    %v347 = vmul.f32 %v346, %v249
    %v348 = vadd.f32 %v344, %v347
    %s349 = sld [smem:[#allocation9 + $0x17]]
    %v350 = vstv %s349
    %v351 = vmul.f32 %v350, %v253
    %v352 = vadd.f32 %v348, %v351
    %v353 = vadd.f32 %v341, %v352
    %354 = vrot.lane.b32.xlu0 %v353, 126
    %v355 = vpop.permute.xlu0 %354
    %v356 = vmax.f32 %v353, %v355
    %v357 = vmul.f32 %v356, %v156
    %358 = vadd.xlane.f32.xlu0 %v357
    %v359 = vpop.xlane.xlu0 %358
    %s360 = sld [smem:[#allocation9 + $0x18]]
    %v361 = vstv %s360
    %v362 = vmul.f32 %v361, %v182
    %s363 = sld [smem:[#allocation9 + $0x19]]
    %v364 = vstv %s363
    %v365 = vmul.f32 %v364, %v180
    %v366 = vadd.f32 %v362, %v365
    %s367 = sld [smem:[#allocation9 + $0x1a]]
    %v368 = vstv %s367
    %v369 = vmul.f32 %v368, %v184
    %v370 = vadd.f32 %v366, %v369
    %s371 = sld [smem:[#allocation9 + $0x1b]]
    %v372 = vstv %s371
    %v373 = vmul.f32 %v372, %v205
    %s374 = sld [smem:[#allocation9 + $0x1c]]
    %v375 = vstv %s374
    %v376 = vmul.f32 %v375, %v203
    %v377 = vadd.f32 %v373, %v376
    %s378 = sld [smem:[#allocation9 + $0x1d]]
    %v379 = vstv %s378
    %v380 = vmul.f32 %v379, %v207
    %v381 = vadd.f32 %v377, %v380
    %v382 = vadd.f32 %v370, %v381
    %s383 = sld [smem:[#allocation9 + $0x1e]]
    %v384 = vstv %s383
    %v385 = vmul.f32 %v384, %v228
    %s386 = sld [smem:[#allocation9 + $0x1f]]
    %v387 = vstv %s386
    %v388 = vmul.f32 %v387, %v226
    %v389 = vadd.f32 %v385, %v388
    %s390 = sld [smem:[#allocation9 + $0x20]]
    %v391 = vstv %s390
    %v392 = vmul.f32 %v391, %v230
    %v393 = vadd.f32 %v389, %v392
    %v394 = vadd.f32 %v382, %v393
    %s395 = sld [smem:[#allocation9 + $0x21]]
    %v396 = vstv %s395
    %v397 = vmul.f32 %v396, %v251
    %s398 = sld [smem:[#allocation9 + $0x22]]
    %v399 = vstv %s398
    %v400 = vmul.f32 %v399, %v249
    %v401 = vadd.f32 %v397, %v400
    %s402 = sld [smem:[#allocation9 + $0x23]]
    %v403 = vstv %s402
    %v404 = vmul.f32 %v403, %v253
    %v405 = vadd.f32 %v401, %v404
    %v406 = vadd.f32 %v394, %v405
    %407 = vrot.lane.b32.xlu0 %v406, 126
    %v408 = vpop.permute.xlu0 %407
    %v409 = vmax.f32 %v406, %v408
    %v410 = vmul.f32 %v409, %v156
    %411 = vadd.xlane.f32.xlu0 %v410
    %v412 = vpop.xlane.xlu0 %411
    %s413 = sld [smem:[#allocation9 + $0x24]]
    %v414 = vstv %s413
    %v415 = vmul.f32 %v414, %v182
    %s416 = sld [smem:[#allocation9 + $0x25]]
    %v417 = vstv %s416
    %v418 = vmul.f32 %v417, %v180
    %v419 = vadd.f32 %v415, %v418
    %s420 = sld [smem:[#allocation9 + $0x26]]
    %v421 = vstv %s420
    %v422 = vmul.f32 %v421, %v184
    %v423 = vadd.f32 %v419, %v422
    %s424 = sld [smem:[#allocation9 + $0x27]]
    %v425 = vstv %s424
    %v426 = vmul.f32 %v425, %v205
    %s427 = sld [smem:[#allocation9 + $0x28]]
    %v428 = vstv %s427
    %v429 = vmul.f32 %v428, %v203
    %v430 = vadd.f32 %v426, %v429
    %s431 = sld [smem:[#allocation9 + $0x29]]
    %v432 = vstv %s431
    %v433 = vmul.f32 %v432, %v207
    %v434 = vadd.f32 %v430, %v433
    %v435 = vadd.f32 %v423, %v434
    %s436 = sld [smem:[#allocation9 + $0x2a]]
    %v437 = vstv %s436
    %v438 = vmul.f32 %v437, %v228
    %s439 = sld [smem:[#allocation9 + $0x2b]]
    %v440 = vstv %s439
    %v441 = vmul.f32 %v440, %v226
    %v442 = vadd.f32 %v438, %v441
    %s443 = sld [smem:[#allocation9 + $0x2c]]
    %v444 = vstv %s443
    %v445 = vmul.f32 %v444, %v230
    %v446 = vadd.f32 %v442, %v445
    %v447 = vadd.f32 %v435, %v446
    %s448 = sld [smem:[#allocation9 + $0x2d]]
    %v449 = vstv %s448
    %v450 = vmul.f32 %v449, %v251
    %s451 = sld [smem:[#allocation9 + $0x2e]]
    %v452 = vstv %s451
    %v453 = vmul.f32 %v452, %v249
    %v454 = vadd.f32 %v450, %v453
    %s455 = sld [smem:[#allocation9 + $0x2f]]
    %v456 = vstv %s455
    %v457 = vmul.f32 %v456, %v253
    %v458 = vadd.f32 %v454, %v457
    %v459 = vadd.f32 %v447, %v458
    %460 = vrot.lane.b32.xlu0 %v459, 126
    %v461 = vpop.permute.xlu0 %460
    %v462 = vmax.f32 %v459, %v461
    %v463 = vmul.f32 %v462, %v156
    %464 = vadd.xlane.f32.xlu0 %v463
    %v465 = vpop.xlane.xlu0 %464
    %s466 = sld [smem:[#allocation9 + $0x30]]
    %v467 = vstv %s466
    %v468 = vmul.f32 %v467, %v182
    %s469 = sld [smem:[#allocation9 + $0x31]]
    %v470 = vstv %s469
    %v471 = vmul.f32 %v470, %v180
    %v472 = vadd.f32 %v468, %v471
    %s473 = sld [smem:[#allocation9 + $0x32]]
    %v474 = vstv %s473
    %v475 = vmul.f32 %v474, %v184
    %v476 = vadd.f32 %v472, %v475
    %s477 = sld [smem:[#allocation9 + $0x33]]
    %v478 = vstv %s477
    %v479 = vmul.f32 %v478, %v205
    %s480 = sld [smem:[#allocation9 + $0x34]]
    %v481 = vstv %s480
    %v482 = vmul.f32 %v481, %v203
    %v483 = vadd.f32 %v479, %v482
    %s484 = sld [smem:[#allocation9 + $0x35]]
    %v485 = vstv %s484
    %v486 = vmul.f32 %v485, %v207
    %v487 = vadd.f32 %v483, %v486
    %v488 = vadd.f32 %v476, %v487
    %s489 = sld [smem:[#allocation9 + $0x36]]
    %v490 = vstv %s489
    %v491 = vmul.f32 %v490, %v228
    %s492 = sld [smem:[#allocation9 + $0x37]]
    %v493 = vstv %s492
    %v494 = vmul.f32 %v493, %v226
    %v495 = vadd.f32 %v491, %v494
    %s496 = sld [smem:[#allocation9 + $0x38]]
    %v497 = vstv %s496
    %v498 = vmul.f32 %v497, %v230
    %v499 = vadd.f32 %v495, %v498
    %v500 = vadd.f32 %v488, %v499
    %s501 = sld [smem:[#allocation9 + $0x39]]
    %v502 = vstv %s501
    %v503 = vmul.f32 %v502, %v251
    %s504 = sld [smem:[#allocation9 + $0x3a]]
    %v505 = vstv %s504
    %v506 = vmul.f32 %v505, %v249
    %v507 = vadd.f32 %v503, %v506
    %s508 = sld [smem:[#allocation9 + $0x3b]]
    %v509 = vstv %s508
    %v510 = vmul.f32 %v509, %v253
    %v511 = vadd.f32 %v507, %v510
    %v512 = vadd.f32 %v500, %v511
    %513 = vrot.lane.b32.xlu0 %v512, 126
    %v514 = vpop.permute.xlu0 %513
    %v515 = vmax.f32 %v512, %v514
    %v516 = vmul.f32 %v515, %v156
    %517 = vadd.xlane.f32.xlu0 %v516
    %v518 = vpop.xlane.xlu0 %517
    %s519 = sld [smem:[#allocation9 + $0x3c]]
    %v520 = vstv %s519
    %v521 = vmul.f32 %v520, %v182
    %s522 = sld [smem:[#allocation9 + $0x3d]]
    %v523 = vstv %s522
    %v524 = vmul.f32 %v523, %v180
    %v525 = vadd.f32 %v521, %v524
    %s526 = sld [smem:[#allocation9 + $0x3e]]
    %v527 = vstv %s526
    %v528 = vmul.f32 %v527, %v184
    %v529 = vadd.f32 %v525, %v528
    %s530 = sld [smem:[#allocation9 + $0x3f]]
    %v531 = vstv %s530
    %v532 = vmul.f32 %v531, %v205
    %s533 = sld [smem:[#allocation9 + $0x40]]
    %v534 = vstv %s533
    %v535 = vmul.f32 %v534, %v203
    %v536 = vadd.f32 %v532, %v535
    %s537 = sld [smem:[#allocation9 + $0x41]]
    %v538 = vstv %s537
    %v539 = vmul.f32 %v538, %v207
    %v540 = vadd.f32 %v536, %v539
    %v541 = vadd.f32 %v529, %v540
    %s542 = sld [smem:[#allocation9 + $0x42]]
    %v543 = vstv %s542
    %v544 = vmul.f32 %v543, %v228
    %s545 = sld [smem:[#allocation9 + $0x43]]
    %v546 = vstv %s545
    %v547 = vmul.f32 %v546, %v226
    %v548 = vadd.f32 %v544, %v547
    %s549 = sld [smem:[#allocation9 + $0x44]]
    %v550 = vstv %s549
    %v551 = vmul.f32 %v550, %v230
    %v552 = vadd.f32 %v548, %v551
    %v553 = vadd.f32 %v541, %v552
    %s554 = sld [smem:[#allocation9 + $0x45]]
    %v555 = vstv %s554
    %v556 = vmul.f32 %v555, %v251
    %s557 = sld [smem:[#allocation9 + $0x46]]
    %v558 = vstv %s557
    %v559 = vmul.f32 %v558, %v249
    %v560 = vadd.f32 %v556, %v559
    %s561 = sld [smem:[#allocation9 + $0x47]]
    %v562 = vstv %s561
    %v563 = vmul.f32 %v562, %v253
    %v564 = vadd.f32 %v560, %v563
    %v565 = vadd.f32 %v553, %v564
    %566 = vrot.lane.b32.xlu0 %v565, 126
    %v567 = vpop.permute.xlu0 %566
    %v568 = vmax.f32 %v565, %v567
    %v569 = vmul.f32 %v568, %v156
    %570 = vadd.xlane.f32.xlu0 %v569
    %v571 = vpop.xlane.xlu0 %570
    %s572 = sld [smem:[#allocation9 + $0x48]]
    %v573 = vstv %s572
    %v574 = vmul.f32 %v573, %v182
    %s575 = sld [smem:[#allocation9 + $0x49]]
    %v576 = vstv %s575
    %v577 = vmul.f32 %v576, %v180
    %v578 = vadd.f32 %v574, %v577
    %s579 = sld [smem:[#allocation9 + $0x4a]]
    %v580 = vstv %s579
    %v581 = vmul.f32 %v580, %v184
    %v582 = vadd.f32 %v578, %v581
    %s583 = sld [smem:[#allocation9 + $0x4b]]
    %v584 = vstv %s583
    %v585 = vmul.f32 %v584, %v205
    %s586 = sld [smem:[#allocation9 + $0x4c]]
    %v587 = vstv %s586
    %v588 = vmul.f32 %v587, %v203
    %v589 = vadd.f32 %v585, %v588
    %s590 = sld [smem:[#allocation9 + $0x4d]]
    %v591 = vstv %s590
    %v592 = vmul.f32 %v591, %v207
    %v593 = vadd.f32 %v589, %v592
    %v594 = vadd.f32 %v582, %v593
    %s595 = sld [smem:[#allocation9 + $0x4e]]
    %v596 = vstv %s595
    %v597 = vmul.f32 %v596, %v228
    %s598 = sld [smem:[#allocation9 + $0x4f]]
    %v599 = vstv %s598
    %v600 = vmul.f32 %v599, %v226
    %v601 = vadd.f32 %v597, %v600
    %s602 = sld [smem:[#allocation9 + $0x50]]
    %v603 = vstv %s602
    %v604 = vmul.f32 %v603, %v230
    %v605 = vadd.f32 %v601, %v604
    %v606 = vadd.f32 %v594, %v605
    %s607 = sld [smem:[#allocation9 + $0x51]]
    %v608 = vstv %s607
    %v609 = vmul.f32 %v608, %v251
    %s610 = sld [smem:[#allocation9 + $0x52]]
    %v611 = vstv %s610
    %v612 = vmul.f32 %v611, %v249
    %v613 = vadd.f32 %v609, %v612
    %s614 = sld [smem:[#allocation9 + $0x53]]
    %v615 = vstv %s614
    %v616 = vmul.f32 %v615, %v253
    %v617 = vadd.f32 %v613, %v616
    %v618 = vadd.f32 %v606, %v617
    %619 = vrot.lane.b32.xlu0 %v618, 126
    %v620 = vpop.permute.xlu0 %619
    %v621 = vmax.f32 %v618, %v620
    %v622 = vmul.f32 %v621, %v156
    %623 = vadd.xlane.f32.xlu0 %v622
    %v624 = vpop.xlane.xlu0 %623
    %s625 = sld [smem:[#allocation9 + $0x54]]
    %v626 = vstv %s625
    %v627 = vmul.f32 %v626, %v182
    %s628 = sld [smem:[#allocation9 + $0x55]]
    %v629 = vstv %s628
    %v630 = vmul.f32 %v629, %v180
    %v631 = vadd.f32 %v627, %v630
    %s632 = sld [smem:[#allocation9 + $0x56]]
    %v633 = vstv %s632
    %v634 = vmul.f32 %v633, %v184
    %v635 = vadd.f32 %v631, %v634
    %s636 = sld [smem:[#allocation9 + $0x57]]
    %v637 = vstv %s636
    %v638 = vmul.f32 %v637, %v205
    %s639 = sld [smem:[#allocation9 + $0x58]]
    %v640 = vstv %s639
    %v641 = vmul.f32 %v640, %v203
    %v642 = vadd.f32 %v638, %v641
    %s643 = sld [smem:[#allocation9 + $0x59]]
    %v644 = vstv %s643
    %v645 = vmul.f32 %v644, %v207
    %v646 = vadd.f32 %v642, %v645
    %v647 = vadd.f32 %v635, %v646
    %s648 = sld [smem:[#allocation9 + $0x5a]]
    %v649 = vstv %s648
    %v650 = vmul.f32 %v649, %v228
    %s651 = sld [smem:[#allocation9 + $0x5b]]
    %v652 = vstv %s651
    %v653 = vmul.f32 %v652, %v226
    %v654 = vadd.f32 %v650, %v653
    %s655 = sld [smem:[#allocation9 + $0x5c]]
    %v656 = vstv %s655
    %v657 = vmul.f32 %v656, %v230
    %v658 = vadd.f32 %v654, %v657
    %v659 = vadd.f32 %v647, %v658
    %s660 = sld [smem:[#allocation9 + $0x5d]]
    %v661 = vstv %s660
    %v662 = vmul.f32 %v661, %v251
    %s663 = sld [smem:[#allocation9 + $0x5e]]
    %v664 = vstv %s663
    %v665 = vmul.f32 %v664, %v249
    %v666 = vadd.f32 %v662, %v665
    %s667 = sld [smem:[#allocation9 + $0x5f]]
    %v668 = vstv %s667
    %v669 = vmul.f32 %v668, %v253
    %v670 = vadd.f32 %v666, %v669
    %v671 = vadd.f32 %v659, %v670
    %672 = vrot.lane.b32.xlu0 %v671, 126
    %v673 = vpop.permute.xlu0 %672
    %v674 = vmax.f32 %v671, %v673
    %v675 = vmul.f32 %v674, %v156
    %676 = vadd.xlane.f32.xlu0 %v675
    %v677 = vpop.xlane.xlu0 %676
    %vm678 = vcmask 7168
    %v679 = vsel %vm678, %v306, %v359
    %vm680 = vcmask 15360
    %v681 = vsel %vm680, %v679, %v412
    %vm682 = vcmask 23552
    %v683 = vsel %vm682, %v681, %v465
    %vm684 = vcmask 31744
    %v685 = vsel %vm684, %v683, %v518
    %vm686 = vcmask 39936
    %v687 = vsel %vm686, %v685, %v571
    %vm688 = vcmask 48128
    %v689 = vsel %vm688, %v687, %v624
    %vm690 = vcmask 56320
    %v691 = vsel %vm690, %v689, %v677
    %v692 = vld [vmem:[#allocation10] sm:$0x1]
    %v694 = vlaneseq
    %v695 = vshrl.u32 %v694, 7
    %v696 = vsub.s32 0, %v695
    %v697 = vrot.slane %v692, %v696
    %v699 = vadd.f32 %v691, %v697
    %v700 = vld [vmem:[#allocation12] sm:$0xff]
    %v701 = vld [vmem:[#allocation13] sm:$0x1]
    %v703 = vlaneseq
    %v704 = vshrl.u32 %v703, 7
    %v705 = vsub.s32 0, %v704
    %v706 = vrot.slane %v701, %v705
    %vm708 = vcmask 64512
    %v710 = vsel %vm708, %v699, 0
    %712 = vmatprep.subr.mxu0 0.0
    %713 = vmatpush1.msra.mxu0 %v700
    %714 = vmatprep.subr.mxu0 0.0
    %715 = vmatpush1.msra.mxu0 0.0
    %716 = vmatprep.subr.mxu0 0.0
    %717 = vmatpush1.msra.mxu0 0.0
    %718 = vmatprep.subr.mxu0 0.0
    %719 = vmatpush1.msra.mxu0 0.0
    %720 = vmatprep.subr.mxu0 0.0
    %721 = vmatpush1.msra.mxu0 0.0
    %722 = vmatprep.subr.mxu0 0.0
    %723 = vmatpush1.msra.mxu0 0.0
    %724 = vmatprep.subr.mxu0 0.0
    %725 = vmatpush1.msra.mxu0 0.0
    %726 = vmatprep.subr.mxu0 0.0
    %727 = vmatpush1.msra.mxu0 0.0
    %728 = vmatprep.subr.mxu0 0.0
    %729 = vmatpush1.msra.mxu0 0.0
    %730 = vmatprep.subr.mxu0 0.0
    %731 = vmatpush1.msra.mxu0 0.0
    %732 = vmatprep.subr.mxu0 0.0
    %733 = vmatpush1.msra.mxu0 0.0
    %734 = vmatprep.subr.mxu0 0.0
    %735 = vmatpush1.msra.mxu0 0.0
    %736 = vmatprep.subr.mxu0 0.0
    %737 = vmatpush1.msra.mxu0 0.0
    %738 = vmatprep.subr.mxu0 0.0
    %739 = vmatpush1.msra.mxu0 0.0
    %740 = vmatprep.subr.mxu0 0.0
    %741 = vmatpush1.msra.mxu0 0.0
    %742 = vmatprep.subr.mxu0 0.0
    %743 = vmatpush1.msra.mxu0 0.0
    %744 = vmatprep.subr.mxu0 0.0
    %745 = vmatpush1.msra.mxu0 0.0
    %746 = vmatprep.subr.mxu0 0.0
    %747 = vmatpush1.msra.mxu0 0.0
    %748 = vmatprep.subr.mxu0 0.0
    %749 = vmatpush1.msra.mxu0 0.0
    %750 = vmatprep.subr.mxu0 0.0
    %751 = vmatpush1.msra.mxu0 0.0
    %752 = vmatprep.subr.mxu0 0.0
    %753 = vmatpush1.msra.mxu0 0.0
    %754 = vmatprep.subr.mxu0 0.0
    %755 = vmatpush1.msra.mxu0 0.0
    %756 = vmatprep.subr.mxu0 0.0
    %757 = vmatpush1.msra.mxu0 0.0
    %758 = vmatprep.subr.mxu0 0.0
    %759 = vmatpush1.msra.mxu0 0.0
    %760 = vmatprep.subr.mxu0 0.0
    %761 = vmatpush1.msra.mxu0 0.0
    %762 = vmatprep.subr.mxu0 0.0
    %763 = vmatpush1.msra.mxu0 0.0
    %764 = vmatprep.subr.mxu0 0.0
    %765 = vmatpush1.msra.mxu0 0.0
    %766 = vmatprep.subr.mxu0 0.0
    %767 = vmatpush1.msra.mxu0 0.0
    %768 = vmatprep.subr.mxu0 0.0
    %769 = vmatpush1.msra.mxu0 0.0
    %770 = vmatprep.subr.mxu0 0.0
    %771 = vmatpush1.msra.mxu0 0.0
    %772 = vmatprep.subr.mxu0 0.0
    %773 = vmatpush1.msra.mxu0 0.0
    %774 = vmatprep.subr.mxu0 0.0
    %775 = vmatpush1.msra.mxu0 0.0
    %776 = vmatprep.mubr.f32.mxu0 0.0
    %777 = vmatmul.mubr.f32.gmra.mrb[0].mxu0 %v710
    %v778 = vpop.f32.mrb[0].mxu0
    %v779 = vadd.f32 %v706, %v778
    %v780 = vpop.f32.mrb[0].mxu0
    %781 = vdwg.mxu0
    %v782 = vmax.f32 %v779, 0.0
    %v783 = vld [vmem:[#allocation15] sm:$0xff]
    %v784 = vld [vmem:[#allocation15 + $0x8] sm:$0xff]
    %v785 = vld [vmem:[#allocation15 + $0x10] sm:$0xff]
    %v786 = vld [vmem:[#allocation15 + $0x18] sm:$0xff]
    %v787 = vld [vmem:[#allocation15 + $0x20] sm:$0xff]
    %v788 = vld [vmem:[#allocation15 + $0x28] sm:$0xff]
    %v789 = vld [vmem:[#allocation15 + $0x30] sm:$0xff]
    %v790 = vld [vmem:[#allocation15 + $0x38] sm:$0xff]
    %v791 = vld [vmem:[#allocation16] sm:$0x1]
    %v793 = vlaneseq
    %v794 = vshrl.u32 %v793, 7
    %v795 = vsub.s32 0, %v794
    %v796 = vrot.slane %v791, %v795
    %vm798 = vcmask 523264
    %v800 = vsel %vm798, %v782, 0
    %802 = vmatprep.subr.mxu0 0.0
    %803 = vmatpush1.msra.mxu0 %v783
    %804 = vmatprep.subr.mxu0 0.0
    %805 = vmatpush1.msra.mxu0 %v784
    %806 = vmatprep.subr.mxu0 0.0
    %807 = vmatpush1.msra.mxu0 %v785
    %808 = vmatprep.subr.mxu0 0.0
    %809 = vmatpush1.msra.mxu0 %v786
    %810 = vmatprep.subr.mxu0 0.0
    %811 = vmatpush1.msra.mxu0 %v787
    %812 = vmatprep.subr.mxu0 0.0
    %813 = vmatpush1.msra.mxu0 %v788
    %814 = vmatprep.subr.mxu0 0.0
    %815 = vmatpush1.msra.mxu0 %v789
    %816 = vmatprep.subr.mxu0 0.0
    %817 = vmatpush1.msra.mxu0 %v790
    %818 = vmatprep.subr.mxu0 0.0
    %819 = vmatpush1.msra.mxu0 0.0
    %820 = vmatprep.subr.mxu0 0.0
    %821 = vmatpush1.msra.mxu0 0.0
    %822 = vmatprep.subr.mxu0 0.0
    %823 = vmatpush1.msra.mxu0 0.0
    %824 = vmatprep.subr.mxu0 0.0
    %825 = vmatpush1.msra.mxu0 0.0
    %826 = vmatprep.subr.mxu0 0.0
    %827 = vmatpush1.msra.mxu0 0.0
    %828 = vmatprep.subr.mxu0 0.0
    %829 = vmatpush1.msra.mxu0 0.0
    %830 = vmatprep.subr.mxu0 0.0
    %831 = vmatpush1.msra.mxu0 0.0
    %832 = vmatprep.subr.mxu0 0.0
    %833 = vmatpush1.msra.mxu0 0.0
    %834 = vmatprep.subr.mxu0 0.0
    %835 = vmatpush1.msra.mxu0 0.0
    %836 = vmatprep.subr.mxu0 0.0
    %837 = vmatpush1.msra.mxu0 0.0
    %838 = vmatprep.subr.mxu0 0.0
    %839 = vmatpush1.msra.mxu0 0.0
    %840 = vmatprep.subr.mxu0 0.0
    %841 = vmatpush1.msra.mxu0 0.0
    %842 = vmatprep.subr.mxu0 0.0
    %843 = vmatpush1.msra.mxu0 0.0
    %844 = vmatprep.subr.mxu0 0.0
    %845 = vmatpush1.msra.mxu0 0.0
    %846 = vmatprep.subr.mxu0 0.0
    %847 = vmatpush1.msra.mxu0 0.0
    %848 = vmatprep.subr.mxu0 0.0
    %849 = vmatpush1.msra.mxu0 0.0
    %850 = vmatprep.subr.mxu0 0.0
    %851 = vmatpush1.msra.mxu0 0.0
    %852 = vmatprep.subr.mxu0 0.0
    %853 = vmatpush1.msra.mxu0 0.0
    %854 = vmatprep.subr.mxu0 0.0
    %855 = vmatpush1.msra.mxu0 0.0
    %856 = vmatprep.subr.mxu0 0.0
    %857 = vmatpush1.msra.mxu0 0.0
    %858 = vmatprep.subr.mxu0 0.0
    %859 = vmatpush1.msra.mxu0 0.0
    %860 = vmatprep.subr.mxu0 0.0
    %861 = vmatpush1.msra.mxu0 0.0
    %862 = vmatprep.subr.mxu0 0.0
    %863 = vmatpush1.msra.mxu0 0.0
    %864 = vmatprep.subr.mxu0 0.0
    %865 = vmatpush1.msra.mxu0 0.0
    %866 = vmatprep.mubr.f32.mxu0 0.0
    %867 = vmatmul.mubr.f32.gmra.mrb[0].mxu0 %v800
    %v868 = vpop.f32.mrb[0].mxu0
    %v869 = vadd.f32 %v796, %v868
    %v870 = vpop.f32.mrb[0].mxu0
    %871 = vdwg.mxu0
    %872 = vst.msk [vmem:[#allocation18] sm:$0xff] %vm680, %v869
    // Predicated region
    $region74: #{tpu_custom_call.1} parent=1 // pred_check
      _
    $region75: #{tpu_custom_call.1} parent=1 // pred_check_branch
      %874 = sbr.rel (0) target = $region77
    $region76: #{tpu_custom_call.1} parent=1 // pred_region
      %s876 = ssub.s32 128, 128
      %877 = vsyncadd [#allocation4], %s876
      %s879 = sshll.u32 [#allocation18], 4
      %s880 = int_to_ptr.vmem [resolvable:$true] %s879
      %882 = dma.vmem_to_hbm [thread:$0]  %s880, 128, %s9, [#allocation4]
    $region77: #{tpu_custom_call.1} parent=1 // pred_fallthru
      _
    // Predicated region
    $region78: #{tpu_custom_call.1} parent=1 // pred_check
      _
    $region79: #{tpu_custom_call.1} parent=1 // pred_check_branch
      %884 = sbr.rel (0) target = $region81
    $region80: #{tpu_custom_call.1} parent=1 // pred_region
      %885 = dma.done [#allocation4], 128
    $region81: #{tpu_custom_call.1} parent=1 // pred_fallthru
      _
    %886 = vsyncpa [#allocation3], 1
    %887 = vsyncpa [#allocation11], 1
    %888 = vsyncpa [#allocation14], 1
    %889 = vsyncpa [#allocation17], 1
    %890 = vsyncpa [#allocation4], 1
    %891 = vsyncpa [#allocation5], 1
    %892 = vsyncpa [#allocation8], 1

</llo_original>
